<compile_context>
chip_gen: v5e
topology: v5e:2x2
jax: 0.10.0
libtpu: 0.0.40
codegen_flags: <defaults>
</compile_context>

<pallas_src>
import functools

import jax
import jax.numpy as jnp
from jax.experimental import pallas as pl
from jax.experimental.pallas import tpu as pltpu


def _round_up(x, m):
    return ((x + m - 1) // m) * m


_VMEM = pl.BlockSpec(memory_space=pltpu.MemorySpace.VMEM)


# ----------------------------------------------------------------------------
# Single fused kernel: conv1 matmul -> conv2 (in-VMEM im2col + matmul) ->
# global average pool -> fc1(+folded BN)+ReLU -> fc2
# ----------------------------------------------------------------------------
def _fused_forward_kernel(p1_ref, w1_ref, b1_ref, w2_ref, b2_ref,
                          w3_ref, b3_ref, w4_ref, b4_ref,
                          o_ref, p2_ref, *, nb, oh1, ow1, oh2, ow2, c1):
    # ---- conv1: (nb*oh1*ow1, K1) @ (K1, c1) + bias, ReLU --------------------
    y1 = jnp.dot(p1_ref[...], w1_ref[...], preferred_element_type=jnp.float32)
    y1 = jnp.maximum(y1 + b1_ref[...], 0.0).astype(jnp.bfloat16)

    # ---- conv2 im2col built in VMEM (k=3, stride=2, pad=1) ------------------
    # P2 row = (n, ho, wo); column block t = kh*3+kw holds the c1 channels of
    # the conv1 output at spatial (2*ho+kh-1, 2*wo+kw-1); out-of-range -> 0.
    zero_c = jnp.zeros((1, c1), jnp.bfloat16)
    zero_kh = jnp.zeros((1, 3 * c1), jnp.bfloat16)
    for n in range(nb):
        for ho in range(oh2):
            for wo in range(ow2):
                pieces = []
                for kh in range(3):
                    hh = 2 * ho + kh - 1
                    if 0 <= hh < oh1:
                        for kw in range(3):
                            ww = 2 * wo + kw - 1
                            if 0 <= ww < ow1:
                                src = (n * oh1 + hh) * ow1 + ww
                                pieces.append(y1[src:src + 1, :])
                            else:
                                pieces.append(zero_c)
                    else:
                        pieces.append(zero_kh)
                dst = (n * oh2 + ho) * ow2 + wo
                p2_ref[dst:dst + 1, :] = jnp.concatenate(pieces, axis=1)

    # ---- conv2 matmul: (nb*oh2*ow2, 9*c1) @ (9*c1, c2) + bias, ReLU ---------
    y2 = jnp.dot(p2_ref[...], w2_ref[...], preferred_element_type=jnp.float32)
    y2 = jnp.maximum(y2 + b2_ref[...], 0.0)            # (nb*oh2*ow2, c2) f32

    # ---- global average pool + head (fc1 + folded BN + ReLU, fc2) -----------
    hw2 = oh2 * ow2
    pooled = jnp.concatenate(
        [jnp.mean(y2[n * hw2:(n + 1) * hw2, :], axis=0, keepdims=True)
         for n in range(nb)], axis=0)                  # (nb, c2) f32
    h = jnp.dot(pooled.astype(jnp.bfloat16), w3_ref[...],
                preferred_element_type=jnp.float32)
    h = jnp.maximum(h + b3_ref[...], 0.0)
    logits = jnp.dot(h.astype(jnp.bfloat16), w4_ref[...],
                     preferred_element_type=jnp.float32) + b4_ref[...]
    o_ref[...] = logits.astype(o_ref.dtype)


def _fused_forward(p1, w1p, b1, w2p, b2, w3p, b3, w4p, b4,
                   *, nb, oh1, ow1, oh2, ow2):
    c1 = w1p.shape[1]
    c2 = w2p.shape[1]
    ncls = w4p.shape[1]
    m2, k2 = nb * oh2 * ow2, w2p.shape[0]

    kernel = functools.partial(_fused_forward_kernel, nb=nb, oh1=oh1, ow1=ow1,
                               oh2=oh2, ow2=ow2, c1=c1)
    flops = 2 * (p1.shape[0] * p1.shape[1] * c1 + m2 * k2 * c2
                 + nb * w3p.shape[0] * w3p.shape[1] + nb * w4p.shape[0] * ncls)
    bytes_accessed = (sum(int(a.size) * a.dtype.itemsize
                          for a in (p1, w1p, b1, w2p, b2, w3p, b3, w4p, b4))
                      + nb * ncls * 4)
    return pl.pallas_call(
        kernel,
        out_shape=jax.ShapeDtypeStruct((nb, ncls), jnp.float32),
        in_specs=[_VMEM] * 9,
        out_specs=_VMEM,
        scratch_shapes=[pltpu.VMEM((m2, k2), jnp.bfloat16)],
        cost_estimate=pl.CostEstimate(flops=flops, transcendentals=0,
                                      bytes_accessed=bytes_accessed),
    )(p1, w1p, b1, w2p, b2, w3p, b3, w4p, b4)


# ----------------------------------------------------------------------------
# Boundary glue: NCHW -> NHWC and conv1 im2col (tiny, one fused XLA chain)
# ----------------------------------------------------------------------------
def _im2col_nhwc(x, *, k, stride, pad):
    n, h, w, c = x.shape
    xp = jnp.pad(x, ((0, 0), (pad, pad), (pad, pad), (0, 0)))
    ho = (h + 2 * pad - k) // stride + 1
    wo = (w + 2 * pad - k) // stride + 1
    cols = []
    for i in range(k):
        for j in range(k):
            cols.append(xp[:, i:i + stride * ho:stride,
                           j:j + stride * wo:stride, :])
    p = jnp.stack(cols, axis=3).reshape(n * ho * wo, k * k * c)
    return p.astype(jnp.bfloat16), ho, wo


def parent_model_simpleconv_forward(packed, x_nchw):
    n = x_nchw.shape[0]
    x = jnp.transpose(x_nchw, (0, 2, 3, 1)).astype(jnp.bfloat16)     # NHWC
    p1, oh1, ow1 = _im2col_nhwc(x, k=3, stride=2, pad=1)             # (M1, 9*Cin)
    k1p = packed["conv1_w"].shape[0]
    p1 = jnp.pad(p1, ((0, 0), (0, k1p - p1.shape[1])))               # K -> 48
    oh2 = (oh1 + 2 - 3) // 2 + 1
    ow2 = (ow1 + 2 - 3) // 2 + 1
    return _fused_forward(p1,
                          packed["conv1_w"], packed["conv1_b"],
                          packed["conv2_w"], packed["conv2_b"],
                          packed["fc1_w"], packed["fc1_b"],
                          packed["fc2_w"], packed["fc2_b"],
                          nb=n, oh1=oh1, ow1=ow1, oh2=oh2, ow2=ow2)


# ----------------------------------------------------------------------------
# Parameter init (PyTorch layouts) + one-time packing for the kernel
# ----------------------------------------------------------------------------
def init_params(key, in_channels, num_classes):
    keys = iter(jax.random.split(key, 8))

    def conv(cout, cin, k):
        fan_in = cin * k * k
        w = jax.random.normal(next(keys), (cout, cin, k, k), jnp.float32)
        return w * jnp.sqrt(2.0 / fan_in), jnp.zeros((cout,), jnp.float32)

    def linear(nout, nin):
        w = jax.random.normal(next(keys), (nout, nin), jnp.float32)
        return w * jnp.sqrt(2.0 / nin), jnp.zeros((nout,), jnp.float32)

    params = {}
    params["conv1"] = conv(32, in_channels, 3)
    params["conv2"] = conv(64, 32, 3)
    params["fc1"] = linear(32, 64)
    # BatchNorm1d(32): (gamma, beta, running_mean, running_var, eps)
    params["bn1"] = (jnp.ones((32,), jnp.float32), jnp.zeros((32,), jnp.float32),
                     jnp.zeros((32,), jnp.float32), jnp.ones((32,), jnp.float32),
                     1e-5)
    params["fc2"] = linear(num_classes, 32)
    return params


def _pack_conv(w, b):
    """(Cout,Cin,kh,kw) -> (k*k*Cin, Cout) bf16, K padded to a multiple of 16."""
    cout, cin, kh, kw = w.shape
    w_mat = jnp.transpose(w, (2, 3, 1, 0)).reshape(kh * kw * cin, cout)
    kp = _round_up(w_mat.shape[0], 16)
    w_p = jnp.pad(w_mat, ((0, kp - w_mat.shape[0]), (0, 0))).astype(jnp.bfloat16)
    return w_p, b.reshape(1, cout).astype(jnp.float32)


def pack_params(params):
    packed = {}
    packed["conv1_w"], packed["conv1_b"] = _pack_conv(*params["conv1"])
    packed["conv2_w"], packed["conv2_b"] = _pack_conv(*params["conv2"])

    # Fold eval-mode BatchNorm1d into fc1.
    w1, b1 = params["fc1"]
    gamma, beta, mean, var, eps = params["bn1"]
    scale = gamma / jnp.sqrt(var + eps)
    packed["fc1_w"] = (w1 * scale[:, None]).T.astype(jnp.bfloat16)      # (64, 32)
    packed["fc1_b"] = ((b1 - mean) * scale + beta).reshape(1, -1).astype(jnp.float32)

    w2, b2 = params["fc2"]
    packed["fc2_w"] = w2.T.astype(jnp.bfloat16)                         # (32, ncls)
    packed["fc2_b"] = b2.reshape(1, -1).astype(jnp.float32)
    return packed


# ----------------------------------------------------------------------------
# Pure-JAX f32 reference (same assumed ConvKernel semantics, eval-mode BN)
# ----------------------------------------------------------------------------
def reference_forward(params, x_nchw):
    def conv_relu(x, w, b):
        y = jax.lax.conv_general_dilated(
            x, w, window_strides=(2, 2), padding=((1, 1), (1, 1)),
            dimension_numbers=("NCHW", "OIHW", "NCHW"))
        return jax.nn.relu(y + b[None, :, None, None])

    x = conv_relu(x_nchw, *params["conv1"])
    x = conv_relu(x, *params["conv2"])
    x = jnp.mean(x, axis=(2, 3))                                        # (N, 64)
    w1, b1 = params["fc1"]
    gamma, beta, mean, var, eps = params["bn1"]
    h = x @ w1.T + b1
    h = (h - mean) / jnp.sqrt(var + eps) * gamma + beta
    h = jax.nn.relu(h)
    w2, b2 = params["fc2"]
    return h @ w2.T + b2


if __name__ == "__main__":
    key = jax.random.PRNGKey(0)
    k_param, k_x = jax.random.split(key)

    in_channels, num_classes = 4, 10
    batch, spatial = 2, 16
    x = jax.random.normal(k_x, (batch, in_channels, spatial, spatial),
                          jnp.float32)

    params = init_params(k_param, in_channels, num_classes)
    packed = pack_params(params)          # one-time weight packing (bf16)

    fwd = jax.jit(parent_model_simpleconv_forward)
    logits = fwd(packed, x)
    jax.block_until_ready(logits)
    assert logits.shape == (batch, num_classes)

    # Tolerance check vs. f32 pure-JAX reference (kernel computes in bf16).
    ref = reference_forward(params, x)
    max_err = float(jnp.max(jnp.abs(logits - ref)))
    scale = max(1.0, float(jnp.max(jnp.abs(ref))))
    assert max_err < 0.08 * scale, f"mismatch vs reference: {max_err}"

    print("KERNEL_OK")
</pallas_src>

<mosaic_0001>
module attributes {stable_mosaic.version = 11 : i64} {
  func.func @_fused_forward_kernel(%arg0: memref<128x48xbf16, #tpu.memory_space<vmem>>, %arg1: memref<48x32xbf16, #tpu.memory_space<vmem>>, %arg2: memref<1x32xf32, #tpu.memory_space<vmem>>, %arg3: memref<288x64xbf16, #tpu.memory_space<vmem>>, %arg4: memref<1x64xf32, #tpu.memory_space<vmem>>, %arg5: memref<64x32xbf16, #tpu.memory_space<vmem>>, %arg6: memref<1x32xf32, #tpu.memory_space<vmem>>, %arg7: memref<32x10xbf16, #tpu.memory_space<vmem>>, %arg8: memref<1x10xf32, #tpu.memory_space<vmem>>, %arg9: memref<2x10xf32, #tpu.memory_space<vmem>>, %arg10: memref<32x288xbf16, #tpu.memory_space<vmem>>) attributes {dimension_semantics = [], scalar_prefetch = 0 : i64, scratch_operands = 1 : i64, tpu.core_type = #tpu.core_type<tc>} {
    %c0 = arith.constant 0 : index
    %c0_0 = arith.constant 0 : index
    %0 = vector.load %arg0[%c0, %c0_0] : memref<128x48xbf16, #tpu.memory_space<vmem>>, vector<128x48xbf16>
    %c0_1 = arith.constant 0 : index
    %c0_2 = arith.constant 0 : index
    %1 = vector.load %arg1[%c0_1, %c0_2] : memref<48x32xbf16, #tpu.memory_space<vmem>>, vector<48x32xbf16>
    %cst = arith.constant dense<0.000000e+00> : vector<128x32xf32>
    %2 = tpu.matmul %0, %1, %cst {dimension_numbers = #tpu.dot_dimension_numbers<[1], [0], [0], [1], [0, 0, 1, 1], [], []>} : vector<128x48xbf16>, vector<48x32xbf16>, vector<128x32xf32> -> vector<128x32xf32>
    %c0_3 = arith.constant 0 : index
    %c0_4 = arith.constant 0 : index
    %3 = vector.load %arg2[%c0_3, %c0_4] : memref<1x32xf32, #tpu.memory_space<vmem>>, vector<1x32xf32>
    %4 = vector.broadcast %3 : vector<1x32xf32> to vector<128x32xf32>
    %5 = arith.addf %2, %4 : vector<128x32xf32>
    %cst_5 = arith.constant 0.000000e+00 : f32
    %6 = vector.broadcast %cst_5 : f32 to vector<128x32xf32>
    %7 = arith.maximumf %5, %6 : vector<128x32xf32>
    %8 = arith.truncf %7 : vector<128x32xf32> to vector<128x32xbf16>
    %cst_6 = arith.constant 0.000000e+00 : bf16
    %9 = vector.broadcast %cst_6 : bf16 to vector<1x32xbf16>
    %cst_7 = arith.constant 0.000000e+00 : bf16
    %10 = vector.broadcast %cst_7 : bf16 to vector<1x96xbf16>
    %11 = vector.extract_strided_slice %8 {offsets = [0, 0], sizes = [1, 32], strides = [1, 1]} : vector<128x32xbf16> to vector<1x32xbf16>
    %12 = vector.extract_strided_slice %8 {offsets = [1, 0], sizes = [1, 32], strides = [1, 1]} : vector<128x32xbf16> to vector<1x32xbf16>
    %13 = vector.extract_strided_slice %8 {offsets = [8, 0], sizes = [1, 32], strides = [1, 1]} : vector<128x32xbf16> to vector<1x32xbf16>
    %14 = vector.extract_strided_slice %8 {offsets = [9, 0], sizes = [1, 32], strides = [1, 1]} : vector<128x32xbf16> to vector<1x32xbf16>
    %15 = tpu.concatenate %10, %9, %11, %12, %9, %13, %14 in 1 : vector<1x96xbf16>, vector<1x32xbf16>, vector<1x32xbf16>, vector<1x32xbf16>, vector<1x32xbf16>, vector<1x32xbf16>, vector<1x32xbf16> -> vector<1x288xbf16>
    %c0_8 = arith.constant 0 : index
    %c0_9 = arith.constant 0 : index
    %16 = vector.load %arg10[%c0_8, %c0_9] : memref<32x288xbf16, #tpu.memory_space<vmem>>, vector<1x288xbf16>
    tpu.vector_store %arg10[%c0_8, %c0_9], %15 {strides = array<i32>} : memref<32x288xbf16, #tpu.memory_space<vmem>>, vector<1x288xbf16>,
    %17 = vector.extract_strided_slice %8 {offsets = [1, 0], sizes = [1, 32], strides = [1, 1]} : vector<128x32xbf16> to vector<1x32xbf16>
    %18 = vector.extract_strided_slice %8 {offsets = [2, 0], sizes = [1, 32], strides = [1, 1]} : vector<128x32xbf16> to vector<1x32xbf16>
    %19 = vector.extract_strided_slice %8 {offsets = [3, 0], sizes = [1, 32], strides = [1, 1]} : vector<128x32xbf16> to vector<1x32xbf16>
    %20 = vector.extract_strided_slice %8 {offsets = [9, 0], sizes = [1, 32], strides = [1, 1]} : vector<128x32xbf16> to vector<1x32xbf16>
    %21 = vector.extract_strided_slice %8 {offsets = [10, 0], sizes = [1, 32], strides = [1, 1]} : vector<128x32xbf16> to vector<1x32xbf16>
    %22 = vector.extract_strided_slice %8 {offsets = [11, 0], sizes = [1, 32], strides = [1, 1]} : vector<128x32xbf16> to vector<1x32xbf16>
    %23 = tpu.concatenate %10, %17, %18, %19, %20, %21, %22 in 1 : vector<1x96xbf16>, vector<1x32xbf16>, vector<1x32xbf16>, vector<1x32xbf16>, vector<1x32xbf16>, vector<1x32xbf16>, vector<1x32xbf16> -> vector<1x288xbf16>
    %c1 = arith.constant 1 : index
    %c0_10 = arith.constant 0 : index
    %24 = vector.load %arg10[%c1, %c0_10] : memref<32x288xbf16, #tpu.memory_space<vmem>>, vector<1x288xbf16>
    tpu.vector_store %arg10[%c1, %c0_10], %23 {strides = array<i32>} : memref<32x288xbf16, #tpu.memory_space<vmem>>, vector<1x288xbf16>,
    %25 = vector.extract_strided_slice %8 {offsets = [3, 0], sizes = [1, 32], strides = [1, 1]} : vector<128x32xbf16> to vector<1x32xbf16>
    %26 = vector.extract_strided_slice %8 {offsets = [4, 0], sizes = [1, 32], strides = [1, 1]} : vector<128x32xbf16> to vector<1x32xbf16>
    %27 = vector.extract_strided_slice %8 {offsets = [5, 0], sizes = [1, 32], strides = [1, 1]} : vector<128x32xbf16> to vector<1x32xbf16>
    %28 = vector.extract_strided_slice %8 {offsets = [11, 0], sizes = [1, 32], strides = [1, 1]} : vector<128x32xbf16> to vector<1x32xbf16>
    %29 = vector.extract_strided_slice %8 {offsets = [12, 0], sizes = [1, 32], strides = [1, 1]} : vector<128x32xbf16> to vector<1x32xbf16>
    %30 = vector.extract_strided_slice %8 {offsets = [13, 0], sizes = [1, 32], strides = [1, 1]} : vector<128x32xbf16> to vector<1x32xbf16>
    %31 = tpu.concatenate %10, %25, %26, %27, %28, %29, %30 in 1 : vector<1x96xbf16>, vector<1x32xbf16>, vector<1x32xbf16>, vector<1x32xbf16>, vector<1x32xbf16>, vector<1x32xbf16>, vector<1x32xbf16> -> vector<1x288xbf16>
    %c2 = arith.constant 2 : index
    %c0_11 = arith.constant 0 : index
    %32 = vector.load %arg10[%c2, %c0_11] : memref<32x288xbf16, #tpu.memory_space<vmem>>, vector<1x288xbf16>
    tpu.vector_store %arg10[%c2, %c0_11], %31 {strides = array<i32>} : memref<32x288xbf16, #tpu.memory_space<vmem>>, vector<1x288xbf16>,
    %33 = vector.extract_strided_slice %8 {offsets = [5, 0], sizes = [1, 32], strides = [1, 1]} : vector<128x32xbf16> to vector<1x32xbf16>
    %34 = vector.extract_strided_slice %8 {offsets = [6, 0], sizes = [1, 32], strides = [1, 1]} : vector<128x32xbf16> to vector<1x32xbf16>
    %35 = vector.extract_strided_slice %8 {offsets = [7, 0], sizes = [1, 32], strides = [1, 1]} : vector<128x32xbf16> to vector<1x32xbf16>
    %36 = vector.extract_strided_slice %8 {offsets = [13, 0], sizes = [1, 32], strides = [1, 1]} : vector<128x32xbf16> to vector<1x32xbf16>
    %37 = vector.extract_strided_slice %8 {offsets = [14, 0], sizes = [1, 32], strides = [1, 1]} : vector<128x32xbf16> to vector<1x32xbf16>
    %38 = vector.extract_strided_slice %8 {offsets = [15, 0], sizes = [1, 32], strides = [1, 1]} : vector<128x32xbf16> to vector<1x32xbf16>
    %39 = tpu.concatenate %10, %33, %34, %35, %36, %37, %38 in 1 : vector<1x96xbf16>, vector<1x32xbf16>, vector<1x32xbf16>, vector<1x32xbf16>, vector<1x32xbf16>, vector<1x32xbf16>, vector<1x32xbf16> -> vector<1x288xbf16>
    %c3 = arith.constant 3 : index
    %c0_12 = arith.constant 0 : index
    %40 = vector.load %arg10[%c3, %c0_12] : memref<32x288xbf16, #tpu.memory_space<vmem>>, vector<1x288xbf16>
    tpu.vector_store %arg10[%c3, %c0_12], %39 {strides = array<i32>} : memref<32x288xbf16, #tpu.memory_space<vmem>>, vector<1x288xbf16>,
    %41 = vector.extract_strided_slice %8 {offsets = [8, 0], sizes = [1, 32], strides = [1, 1]} : vector<128x32xbf16> to vector<1x32xbf16>
    %42 = vector.extract_strided_slice %8 {offsets = [9, 0], sizes = [1, 32], strides = [1, 1]} : vector<128x32xbf16> to vector<1x32xbf16>
    %43 = vector.extract_strided_slice %8 {offsets = [16, 0], sizes = [1, 32], strides = [1, 1]} : vector<128x32xbf16> to vector<1x32xbf16>
    %44 = vector.extract_strided_slice %8 {offsets = [17, 0], sizes = [1, 32], strides = [1, 1]} : vector<128x32xbf16> to vector<1x32xbf16>
    %45 = vector.extract_strided_slice %8 {offsets = [24, 0], sizes = [1, 32], strides = [1, 1]} : vector<128x32xbf16> to vector<1x32xbf16>
    %46 = vector.extract_strided_slice %8 {offsets = [25, 0], sizes = [1, 32], strides = [1, 1]} : vector<128x32xbf16> to vector<1x32xbf16>
    %47 = tpu.concatenate %9, %41, %42, %9, %43, %44, %9, %45, %46 in 1 : vector<1x32xbf16>, vector<1x32xbf16>, vector<1x32xbf16>, vector<1x32xbf16>, vector<1x32xbf16>, vector<1x32xbf16>, vector<1x32xbf16>, vector<1x32xbf16>, vector<1x32xbf16> -> vector<1x288xbf16>
    %c4 = arith.constant 4 : index
    %c0_13 = arith.constant 0 : index
    %48 = vector.load %arg10[%c4, %c0_13] : memref<32x288xbf16, #tpu.memory_space<vmem>>, vector<1x288xbf16>
    tpu.vector_store %arg10[%c4, %c0_13], %47 {strides = array<i32>} : memref<32x288xbf16, #tpu.memory_space<vmem>>, vector<1x288xbf16>,
    %49 = vector.extract_strided_slice %8 {offsets = [9, 0], sizes = [1, 32], strides = [1, 1]} : vector<128x32xbf16> to vector<1x32xbf16>
    %50 = vector.extract_strided_slice %8 {offsets = [10, 0], sizes = [1, 32], strides = [1, 1]} : vector<128x32xbf16> to vector<1x32xbf16>
    %51 = vector.extract_strided_slice %8 {offsets = [11, 0], sizes = [1, 32], strides = [1, 1]} : vector<128x32xbf16> to vector<1x32xbf16>
    %52 = vector.extract_strided_slice %8 {offsets = [17, 0], sizes = [1, 32], strides = [1, 1]} : vector<128x32xbf16> to vector<1x32xbf16>
    %53 = vector.extract_strided_slice %8 {offsets = [18, 0], sizes = [1, 32], strides = [1, 1]} : vector<128x32xbf16> to vector<1x32xbf16>
    %54 = vector.extract_strided_slice %8 {offsets = [19, 0], sizes = [1, 32], strides = [1, 1]} : vector<128x32xbf16> to vector<1x32xbf16>
    %55 = vector.extract_strided_slice %8 {offsets = [25, 0], sizes = [1, 32], strides = [1, 1]} : vector<128x32xbf16> to vector<1x32xbf16>
    %56 = vector.extract_strided_slice %8 {offsets = [26, 0], sizes = [1, 32], strides = [1, 1]} : vector<128x32xbf16> to vector<1x32xbf16>
    %57 = vector.extract_strided_slice %8 {offsets = [27, 0], sizes = [1, 32], strides = [1, 1]} : vector<128x32xbf16> to vector<1x32xbf16>
    %58 = tpu.concatenate %49, %50, %51, %52, %53, %54, %55, %56, %57 in 1 : vector<1x32xbf16>, vector<1x32xbf16>, vector<1x32xbf16>, vector<1x32xbf16>, vector<1x32xbf16>, vector<1x32xbf16>, vector<1x32xbf16>, vector<1x32xbf16>, vector<1x32xbf16> -> vector<1x288xbf16>
    %c5 = arith.constant 5 : index
    %c0_14 = arith.constant 0 : index
    %59 = vector.load %arg10[%c5, %c0_14] : memref<32x288xbf16, #tpu.memory_space<vmem>>, vector<1x288xbf16>
    tpu.vector_store %arg10[%c5, %c0_14], %58 {strides = array<i32>} : memref<32x288xbf16, #tpu.memory_space<vmem>>, vector<1x288xbf16>,
    %60 = vector.extract_strided_slice %8 {offsets = [11, 0], sizes = [1, 32], strides = [1, 1]} : vector<128x32xbf16> to vector<1x32xbf16>
    %61 = vector.extract_strided_slice %8 {offsets = [12, 0], sizes = [1, 32], strides = [1, 1]} : vector<128x32xbf16> to vector<1x32xbf16>
    %62 = vector.extract_strided_slice %8 {offsets = [13, 0], sizes = [1, 32], strides = [1, 1]} : vector<128x32xbf16> to vector<1x32xbf16>
    %63 = vector.extract_strided_slice %8 {offsets = [19, 0], sizes = [1, 32], strides = [1, 1]} : vector<128x32xbf16> to vector<1x32xbf16>
    %64 = vector.extract_strided_slice %8 {offsets = [20, 0], sizes = [1, 32], strides = [1, 1]} : vector<128x32xbf16> to vector<1x32xbf16>
    %65 = vector.extract_strided_slice %8 {offsets = [21, 0], sizes = [1, 32], strides = [1, 1]} : vector<128x32xbf16> to vector<1x32xbf16>
    %66 = vector.extract_strided_slice %8 {offsets = [27, 0], sizes = [1, 32], strides = [1, 1]} : vector<128x32xbf16> to vector<1x32xbf16>
    %67 = vector.extract_strided_slice %8 {offsets = [28, 0], sizes = [1, 32], strides = [1, 1]} : vector<128x32xbf16> to vector<1x32xbf16>
    %68 = vector.extract_strided_slice %8 {offsets = [29, 0], sizes = [1, 32], strides = [1, 1]} : vector<128x32xbf16> to vector<1x32xbf16>
    %69 = tpu.concatenate %60, %61, %62, %63, %64, %65, %66, %67, %68 in 1 : vector<1x32xbf16>, vector<1x32xbf16>, vector<1x32xbf16>, vector<1x32xbf16>, vector<1x32xbf16>, vector<1x32xbf16>, vector<1x32xbf16>, vector<1x32xbf16>, vector<1x32xbf16> -> vector<1x288xbf16>
    %c6 = arith.constant 6 : index
    %c0_15 = arith.constant 0 : index
    %70 = vector.load %arg10[%c6, %c0_15] : memref<32x288xbf16, #tpu.memory_space<vmem>>, vector<1x288xbf16>
    tpu.vector_store %arg10[%c6, %c0_15], %69 {strides = array<i32>} : memref<32x288xbf16, #tpu.memory_space<vmem>>, vector<1x288xbf16>,
    %71 = vector.extract_strided_slice %8 {offsets = [13, 0], sizes = [1, 32], strides = [1, 1]} : vector<128x32xbf16> to vector<1x32xbf16>
    %72 = vector.extract_strided_slice %8 {offsets = [14, 0], sizes = [1, 32], strides = [1, 1]} : vector<128x32xbf16> to vector<1x32xbf16>
    %73 = vector.extract_strided_slice %8 {offsets = [15, 0], sizes = [1, 32], strides = [1, 1]} : vector<128x32xbf16> to vector<1x32xbf16>
    %74 = vector.extract_strided_slice %8 {offsets = [21, 0], sizes = [1, 32], strides = [1, 1]} : vector<128x32xbf16> to vector<1x32xbf16>
    %75 = vector.extract_strided_slice %8 {offsets = [22, 0], sizes = [1, 32], strides = [1, 1]} : vector<128x32xbf16> to vector<1x32xbf16>
    %76 = vector.extract_strided_slice %8 {offsets = [23, 0], sizes = [1, 32], strides = [1, 1]} : vector<128x32xbf16> to vector<1x32xbf16>
    %77 = vector.extract_strided_slice %8 {offsets = [29, 0], sizes = [1, 32], strides = [1, 1]} : vector<128x32xbf16> to vector<1x32xbf16>
    %78 = vector.extract_strided_slice %8 {offsets = [30, 0], sizes = [1, 32], strides = [1, 1]} : vector<128x32xbf16> to vector<1x32xbf16>
    %79 = vector.extract_strided_slice %8 {offsets = [31, 0], sizes = [1, 32], strides = [1, 1]} : vector<128x32xbf16> to vector<1x32xbf16>
    %80 = tpu.concatenate %71, %72, %73, %74, %75, %76, %77, %78, %79 in 1 : vector<1x32xbf16>, vector<1x32xbf16>, vector<1x32xbf16>, vector<1x32xbf16>, vector<1x32xbf16>, vector<1x32xbf16>, vector<1x32xbf16>, vector<1x32xbf16>, vector<1x32xbf16> -> vector<1x288xbf16>
    %c7 = arith.constant 7 : index
    %c0_16 = arith.constant 0 : index
    %81 = vector.load %arg10[%c7, %c0_16] : memref<32x288xbf16, #tpu.memory_space<vmem>>, vector<1x288xbf16>
    tpu.vector_store %arg10[%c7, %c0_16], %80 {strides = array<i32>} : memref<32x288xbf16, #tpu.memory_space<vmem>>, vector<1x288xbf16>,
    %82 = vector.extract_strided_slice %8 {offsets = [24, 0], sizes = [1, 32], strides = [1, 1]} : vector<128x32xbf16> to vector<1x32xbf16>
    %83 = vector.extract_strided_slice %8 {offsets = [25, 0], sizes = [1, 32], strides = [1, 1]} : vector<128x32xbf16> to vector<1x32xbf16>
    %84 = vector.extract_strided_slice %8 {offsets = [32, 0], sizes = [1, 32], strides = [1, 1]} : vector<128x32xbf16> to vector<1x32xbf16>
    %85 = vector.extract_strided_slice %8 {offsets = [33, 0], sizes = [1, 32], strides = [1, 1]} : vector<128x32xbf16> to vector<1x32xbf16>
    %86 = vector.extract_strided_slice %8 {offsets = [40, 0], sizes = [1, 32], strides = [1, 1]} : vector<128x32xbf16> to vector<1x32xbf16>
    %87 = vector.extract_strided_slice %8 {offsets = [41, 0], sizes = [1, 32], strides = [1, 1]} : vector<128x32xbf16> to vector<1x32xbf16>
    %88 = tpu.concatenate %9, %82, %83, %9, %84, %85, %9, %86, %87 in 1 : vector<1x32xbf16>, vector<1x32xbf16>, vector<1x32xbf16>, vector<1x32xbf16>, vector<1x32xbf16>, vector<1x32xbf16>, vector<1x32xbf16>, vector<1x32xbf16>, vector<1x32xbf16> -> vector<1x288xbf16>
    %c8 = arith.constant 8 : index
    %c0_17 = arith.constant 0 : index
    %89 = vector.load %arg10[%c8, %c0_17] : memref<32x288xbf16, #tpu.memory_space<vmem>>, vector<1x288xbf16>
    tpu.vector_store %arg10[%c8, %c0_17], %88 {strides = array<i32>} : memref<32x288xbf16, #tpu.memory_space<vmem>>, vector<1x288xbf16>,
    %90 = vector.extract_strided_slice %8 {offsets = [25, 0], sizes = [1, 32], strides = [1, 1]} : vector<128x32xbf16> to vector<1x32xbf16>
    %91 = vector.extract_strided_slice %8 {offsets = [26, 0], sizes = [1, 32], strides = [1, 1]} : vector<128x32xbf16> to vector<1x32xbf16>
    %92 = vector.extract_strided_slice %8 {offsets = [27, 0], sizes = [1, 32], strides = [1, 1]} : vector<128x32xbf16> to vector<1x32xbf16>
    %93 = vector.extract_strided_slice %8 {offsets = [33, 0], sizes = [1, 32], strides = [1, 1]} : vector<128x32xbf16> to vector<1x32xbf16>
    %94 = vector.extract_strided_slice %8 {offsets = [34, 0], sizes = [1, 32], strides = [1, 1]} : vector<128x32xbf16> to vector<1x32xbf16>
    %95 = vector.extract_strided_slice %8 {offsets = [35, 0], sizes = [1, 32], strides = [1, 1]} : vector<128x32xbf16> to vector<1x32xbf16>
    %96 = vector.extract_strided_slice %8 {offsets = [41, 0], sizes = [1, 32], strides = [1, 1]} : vector<128x32xbf16> to vector<1x32xbf16>
    %97 = vector.extract_strided_slice %8 {offsets = [42, 0], sizes = [1, 32], strides = [1, 1]} : vector<128x32xbf16> to vector<1x32xbf16>
    %98 = vector.extract_strided_slice %8 {offsets = [43, 0], sizes = [1, 32], strides = [1, 1]} : vector<128x32xbf16> to vector<1x32xbf16>
    %99 = tpu.concatenate %90, %91, %92, %93, %94, %95, %96, %97, %98 in 1 : vector<1x32xbf16>, vector<1x32xbf16>, vector<1x32xbf16>, vector<1x32xbf16>, vector<1x32xbf16>, vector<1x32xbf16>, vector<1x32xbf16>, vector<1x32xbf16>, vector<1x32xbf16> -> vector<1x288xbf16>
    %c9 = arith.constant 9 : index
    %c0_18 = arith.constant 0 : index
    %100 = vector.load %arg10[%c9, %c0_18] : memref<32x288xbf16, #tpu.memory_space<vmem>>, vector<1x288xbf16>
    tpu.vector_store %arg10[%c9, %c0_18], %99 {strides = array<i32>} : memref<32x288xbf16, #tpu.memory_space<vmem>>, vector<1x288xbf16>,
    %101 = vector.extract_strided_slice %8 {offsets = [27, 0], sizes = [1, 32], strides = [1, 1]} : vector<128x32xbf16> to vector<1x32xbf16>
    %102 = vector.extract_strided_slice %8 {offsets = [28, 0], sizes = [1, 32], strides = [1, 1]} : vector<128x32xbf16> to vector<1x32xbf16>
    %103 = vector.extract_strided_slice %8 {offsets = [29, 0], sizes = [1, 32], strides = [1, 1]} : vector<128x32xbf16> to vector<1x32xbf16>
    %104 = vector.extract_strided_slice %8 {offsets = [35, 0], sizes = [1, 32], strides = [1, 1]} : vector<128x32xbf16> to vector<1x32xbf16>
    %105 = vector.extract_strided_slice %8 {offsets = [36, 0], sizes = [1, 32], strides = [1, 1]} : vector<128x32xbf16> to vector<1x32xbf16>
    %106 = vector.extract_strided_slice %8 {offsets = [37, 0], sizes = [1, 32], strides = [1, 1]} : vector<128x32xbf16> to vector<1x32xbf16>
    %107 = vector.extract_strided_slice %8 {offsets = [43, 0], sizes = [1, 32], strides = [1, 1]} : vector<128x32xbf16> to vector<1x32xbf16>
    %108 = vector.extract_strided_slice %8 {offsets = [44, 0], sizes = [1, 32], strides = [1, 1]} : vector<128x32xbf16> to vector<1x32xbf16>
    %109 = vector.extract_strided_slice %8 {offsets = [45, 0], sizes = [1, 32], strides = [1, 1]} : vector<128x32xbf16> to vector<1x32xbf16>
    %110 = tpu.concatenate %101, %102, %103, %104, %105, %106, %107, %108, %109 in 1 : vector<1x32xbf16>, vector<1x32xbf16>, vector<1x32xbf16>, vector<1x32xbf16>, vector<1x32xbf16>, vector<1x32xbf16>, vector<1x32xbf16>, vector<1x32xbf16>, vector<1x32xbf16> -> vector<1x288xbf16>
    %c10 = arith.constant 10 : index
    %c0_19 = arith.constant 0 : index
    %111 = vector.load %arg10[%c10, %c0_19] : memref<32x288xbf16, #tpu.memory_space<vmem>>, vector<1x288xbf16>
    tpu.vector_store %arg10[%c10, %c0_19], %110 {strides = array<i32>} : memref<32x288xbf16, #tpu.memory_space<vmem>>, vector<1x288xbf16>,
    %112 = vector.extract_strided_slice %8 {offsets = [29, 0], sizes = [1, 32], strides = [1, 1]} : vector<128x32xbf16> to vector<1x32xbf16>
    %113 = vector.extract_strided_slice %8 {offsets = [30, 0], sizes = [1, 32], strides = [1, 1]} : vector<128x32xbf16> to vector<1x32xbf16>
    %114 = vector.extract_strided_slice %8 {offsets = [31, 0], sizes = [1, 32], strides = [1, 1]} : vector<128x32xbf16> to vector<1x32xbf16>
    %115 = vector.extract_strided_slice %8 {offsets = [37, 0], sizes = [1, 32], strides = [1, 1]} : vector<128x32xbf16> to vector<1x32xbf16>
    %116 = vector.extract_strided_slice %8 {offsets = [38, 0], sizes = [1, 32], strides = [1, 1]} : vector<128x32xbf16> to vector<1x32xbf16>
    %117 = vector.extract_strided_slice %8 {offsets = [39, 0], sizes = [1, 32], strides = [1, 1]} : vector<128x32xbf16> to vector<1x32xbf16>
    %118 = vector.extract_strided_slice %8 {offsets = [45, 0], sizes = [1, 32], strides = [1, 1]} : vector<128x32xbf16> to vector<1x32xbf16>
    %119 = vector.extract_strided_slice %8 {offsets = [46, 0], sizes = [1, 32], strides = [1, 1]} : vector<128x32xbf16> to vector<1x32xbf16>
    %120 = vector.extract_strided_slice %8 {offsets = [47, 0], sizes = [1, 32], strides = [1, 1]} : vector<128x32xbf16> to vector<1x32xbf16>
    %121 = tpu.concatenate %112, %113, %114, %115, %116, %117, %118, %119, %120 in 1 : vector<1x32xbf16>, vector<1x32xbf16>, vector<1x32xbf16>, vector<1x32xbf16>, vector<1x32xbf16>, vector<1x32xbf16>, vector<1x32xbf16>, vector<1x32xbf16>, vector<1x32xbf16> -> vector<1x288xbf16>
    %c11 = arith.constant 11 : index
    %c0_20 = arith.constant 0 : index
    %122 = vector.load %arg10[%c11, %c0_20] : memref<32x288xbf16, #tpu.memory_space<vmem>>, vector<1x288xbf16>
    tpu.vector_store %arg10[%c11, %c0_20], %121 {strides = array<i32>} : memref<32x288xbf16, #tpu.memory_space<vmem>>, vector<1x288xbf16>,
    %123 = vector.extract_strided_slice %8 {offsets = [40, 0], sizes = [1, 32], strides = [1, 1]} : vector<128x32xbf16> to vector<1x32xbf16>
    %124 = vector.extract_strided_slice %8 {offsets = [41, 0], sizes = [1, 32], strides = [1, 1]} : vector<128x32xbf16> to vector<1x32xbf16>
    %125 = vector.extract_strided_slice %8 {offsets = [48, 0], sizes = [1, 32], strides = [1, 1]} : vector<128x32xbf16> to vector<1x32xbf16>
    %126 = vector.extract_strided_slice %8 {offsets = [49, 0], sizes = [1, 32], strides = [1, 1]} : vector<128x32xbf16> to vector<1x32xbf16>
    %127 = vector.extract_strided_slice %8 {offsets = [56, 0], sizes = [1, 32], strides = [1, 1]} : vector<128x32xbf16> to vector<1x32xbf16>
    %128 = vector.extract_strided_slice %8 {offsets = [57, 0], sizes = [1, 32], strides = [1, 1]} : vector<128x32xbf16> to vector<1x32xbf16>
    %129 = tpu.concatenate %9, %123, %124, %9, %125, %126, %9, %127, %128 in 1 : vector<1x32xbf16>, vector<1x32xbf16>, vector<1x32xbf16>, vector<1x32xbf16>, vector<1x32xbf16>, vector<1x32xbf16>, vector<1x32xbf16>, vector<1x32xbf16>, vector<1x32xbf16> -> vector<1x288xbf16>
    %c12 = arith.constant 12 : index
    %c0_21 = arith.constant 0 : index
    %130 = vector.load %arg10[%c12, %c0_21] : memref<32x288xbf16, #tpu.memory_space<vmem>>, vector<1x288xbf16>
    tpu.vector_store %arg10[%c12, %c0_21], %129 {strides = array<i32>} : memref<32x288xbf16, #tpu.memory_space<vmem>>, vector<1x288xbf16>,
    %131 = vector.extract_strided_slice %8 {offsets = [41, 0], sizes = [1, 32], strides = [1, 1]} : vector<128x32xbf16> to vector<1x32xbf16>
    %132 = vector.extract_strided_slice %8 {offsets = [42, 0], sizes = [1, 32], strides = [1, 1]} : vector<128x32xbf16> to vector<1x32xbf16>
    %133 = vector.extract_strided_slice %8 {offsets = [43, 0], sizes = [1, 32], strides = [1, 1]} : vector<128x32xbf16> to vector<1x32xbf16>
    %134 = vector.extract_strided_slice %8 {offsets = [49, 0], sizes = [1, 32], strides = [1, 1]} : vector<128x32xbf16> to vector<1x32xbf16>
    %135 = vector.extract_strided_slice %8 {offsets = [50, 0], sizes = [1, 32], strides = [1, 1]} : vector<128x32xbf16> to vector<1x32xbf16>
    %136 = vector.extract_strided_slice %8 {offsets = [51, 0], sizes = [1, 32], strides = [1, 1]} : vector<128x32xbf16> to vector<1x32xbf16>
    %137 = vector.extract_strided_slice %8 {offsets = [57, 0], sizes = [1, 32], strides = [1, 1]} : vector<128x32xbf16> to vector<1x32xbf16>
    %138 = vector.extract_strided_slice %8 {offsets = [58, 0], sizes = [1, 32], strides = [1, 1]} : vector<128x32xbf16> to vector<1x32xbf16>
    %139 = vector.extract_strided_slice %8 {offsets = [59, 0], sizes = [1, 32], strides = [1, 1]} : vector<128x32xbf16> to vector<1x32xbf16>
    %140 = tpu.concatenate %131, %132, %133, %134, %135, %136, %137, %138, %139 in 1 : vector<1x32xbf16>, vector<1x32xbf16>, vector<1x32xbf16>, vector<1x32xbf16>, vector<1x32xbf16>, vector<1x32xbf16>, vector<1x32xbf16>, vector<1x32xbf16>, vector<1x32xbf16> -> vector<1x288xbf16>
    %c13 = arith.constant 13 : index
    %c0_22 = arith.constant 0 : index
    %141 = vector.load %arg10[%c13, %c0_22] : memref<32x288xbf16, #tpu.memory_space<vmem>>, vector<1x288xbf16>
    tpu.vector_store %arg10[%c13, %c0_22], %140 {strides = array<i32>} : memref<32x288xbf16, #tpu.memory_space<vmem>>, vector<1x288xbf16>,
    %142 = vector.extract_strided_slice %8 {offsets = [43, 0], sizes = [1, 32], strides = [1, 1]} : vector<128x32xbf16> to vector<1x32xbf16>
    %143 = vector.extract_strided_slice %8 {offsets = [44, 0], sizes = [1, 32], strides = [1, 1]} : vector<128x32xbf16> to vector<1x32xbf16>
    %144 = vector.extract_strided_slice %8 {offsets = [45, 0], sizes = [1, 32], strides = [1, 1]} : vector<128x32xbf16> to vector<1x32xbf16>
    %145 = vector.extract_strided_slice %8 {offsets = [51, 0], sizes = [1, 32], strides = [1, 1]} : vector<128x32xbf16> to vector<1x32xbf16>
    %146 = vector.extract_strided_slice %8 {offsets = [52, 0], sizes = [1, 32], strides = [1, 1]} : vector<128x32xbf16> to vector<1x32xbf16>
    %147 = vector.extract_strided_slice %8 {offsets = [53, 0], sizes = [1, 32], strides = [1, 1]} : vector<128x32xbf16> to vector<1x32xbf16>
    %148 = vector.extract_strided_slice %8 {offsets = [59, 0], sizes = [1, 32], strides = [1, 1]} : vector<128x32xbf16> to vector<1x32xbf16>
    %149 = vector.extract_strided_slice %8 {offsets = [60, 0], sizes = [1, 32], strides = [1, 1]} : vector<128x32xbf16> to vector<1x32xbf16>
    %150 = vector.extract_strided_slice %8 {offsets = [61, 0], sizes = [1, 32], strides = [1, 1]} : vector<128x32xbf16> to vector<1x32xbf16>
    %151 = tpu.concatenate %142, %143, %144, %145, %146, %147, %148, %149, %150 in 1 : vector<1x32xbf16>, vector<1x32xbf16>, vector<1x32xbf16>, vector<1x32xbf16>, vector<1x32xbf16>, vector<1x32xbf16>, vector<1x32xbf16>, vector<1x32xbf16>, vector<1x32xbf16> -> vector<1x288xbf16>
    %c14 = arith.constant 14 : index
    %c0_23 = arith.constant 0 : index
    %152 = vector.load %arg10[%c14, %c0_23] : memref<32x288xbf16, #tpu.memory_space<vmem>>, vector<1x288xbf16>
    tpu.vector_store %arg10[%c14, %c0_23], %151 {strides = array<i32>} : memref<32x288xbf16, #tpu.memory_space<vmem>>, vector<1x288xbf16>,
    %153 = vector.extract_strided_slice %8 {offsets = [45, 0], sizes = [1, 32], strides = [1, 1]} : vector<128x32xbf16> to vector<1x32xbf16>
    %154 = vector.extract_strided_slice %8 {offsets = [46, 0], sizes = [1, 32], strides = [1, 1]} : vector<128x32xbf16> to vector<1x32xbf16>
    %155 = vector.extract_strided_slice %8 {offsets = [47, 0], sizes = [1, 32], strides = [1, 1]} : vector<128x32xbf16> to vector<1x32xbf16>
    %156 = vector.extract_strided_slice %8 {offsets = [53, 0], sizes = [1, 32], strides = [1, 1]} : vector<128x32xbf16> to vector<1x32xbf16>
    %157 = vector.extract_strided_slice %8 {offsets = [54, 0], sizes = [1, 32], strides = [1, 1]} : vector<128x32xbf16> to vector<1x32xbf16>
    %158 = vector.extract_strided_slice %8 {offsets = [55, 0], sizes = [1, 32], strides = [1, 1]} : vector<128x32xbf16> to vector<1x32xbf16>
    %159 = vector.extract_strided_slice %8 {offsets = [61, 0], sizes = [1, 32], strides = [1, 1]} : vector<128x32xbf16> to vector<1x32xbf16>
    %160 = vector.extract_strided_slice %8 {offsets = [62, 0], sizes = [1, 32], strides = [1, 1]} : vector<128x32xbf16> to vector<1x32xbf16>
    %161 = vector.extract_strided_slice %8 {offsets = [63, 0], sizes = [1, 32], strides = [1, 1]} : vector<128x32xbf16> to vector<1x32xbf16>
    %162 = tpu.concatenate %153, %154, %155, %156, %157, %158, %159, %160, %161 in 1 : vector<1x32xbf16>, vector<1x32xbf16>, vector<1x32xbf16>, vector<1x32xbf16>, vector<1x32xbf16>, vector<1x32xbf16>, vector<1x32xbf16>, vector<1x32xbf16>, vector<1x32xbf16> -> vector<1x288xbf16>
    %c15 = arith.constant 15 : index
    %c0_24 = arith.constant 0 : index
    %163 = vector.load %arg10[%c15, %c0_24] : memref<32x288xbf16, #tpu.memory_space<vmem>>, vector<1x288xbf16>
    tpu.vector_store %arg10[%c15, %c0_24], %162 {strides = array<i32>} : memref<32x288xbf16, #tpu.memory_space<vmem>>, vector<1x288xbf16>,
    %164 = vector.extract_strided_slice %8 {offsets = [64, 0], sizes = [1, 32], strides = [1, 1]} : vector<128x32xbf16> to vector<1x32xbf16>
    %165 = vector.extract_strided_slice %8 {offsets = [65, 0], sizes = [1, 32], strides = [1, 1]} : vector<128x32xbf16> to vector<1x32xbf16>
    %166 = vector.extract_strided_slice %8 {offsets = [72, 0], sizes = [1, 32], strides = [1, 1]} : vector<128x32xbf16> to vector<1x32xbf16>
    %167 = vector.extract_strided_slice %8 {offsets = [73, 0], sizes = [1, 32], strides = [1, 1]} : vector<128x32xbf16> to vector<1x32xbf16>
    %168 = tpu.concatenate %10, %9, %164, %165, %9, %166, %167 in 1 : vector<1x96xbf16>, vector<1x32xbf16>, vector<1x32xbf16>, vector<1x32xbf16>, vector<1x32xbf16>, vector<1x32xbf16>, vector<1x32xbf16> -> vector<1x288xbf16>
    %c16 = arith.constant 16 : index
    %c0_25 = arith.constant 0 : index
    %169 = vector.load %arg10[%c16, %c0_25] : memref<32x288xbf16, #tpu.memory_space<vmem>>, vector<1x288xbf16>
    tpu.vector_store %arg10[%c16, %c0_25], %168 {strides = array<i32>} : memref<32x288xbf16, #tpu.memory_space<vmem>>, vector<1x288xbf16>,
    %170 = vector.extract_strided_slice %8 {offsets = [65, 0], sizes = [1, 32], strides = [1, 1]} : vector<128x32xbf16> to vector<1x32xbf16>
    %171 = vector.extract_strided_slice %8 {offsets = [66, 0], sizes = [1, 32], strides = [1, 1]} : vector<128x32xbf16> to vector<1x32xbf16>
    %172 = vector.extract_strided_slice %8 {offsets = [67, 0], sizes = [1, 32], strides = [1, 1]} : vector<128x32xbf16> to vector<1x32xbf16>
    %173 = vector.extract_strided_slice %8 {offsets = [73, 0], sizes = [1, 32], strides = [1, 1]} : vector<128x32xbf16> to vector<1x32xbf16>
    %174 = vector.extract_strided_slice %8 {offsets = [74, 0], sizes = [1, 32], strides = [1, 1]} : vector<128x32xbf16> to vector<1x32xbf16>
    %175 = vector.extract_strided_slice %8 {offsets = [75, 0], sizes = [1, 32], strides = [1, 1]} : vector<128x32xbf16> to vector<1x32xbf16>
    %176 = tpu.concatenate %10, %170, %171, %172, %173, %174, %175 in 1 : vector<1x96xbf16>, vector<1x32xbf16>, vector<1x32xbf16>, vector<1x32xbf16>, vector<1x32xbf16>, vector<1x32xbf16>, vector<1x32xbf16> -> vector<1x288xbf16>
    %c17 = arith.constant 17 : index
    %c0_26 = arith.constant 0 : index
    %177 = vector.load %arg10[%c17, %c0_26] : memref<32x288xbf16, #tpu.memory_space<vmem>>, vector<1x288xbf16>
    tpu.vector_store %arg10[%c17, %c0_26], %176 {strides = array<i32>} : memref<32x288xbf16, #tpu.memory_space<vmem>>, vector<1x288xbf16>,
    %178 = vector.extract_strided_slice %8 {offsets = [67, 0], sizes = [1, 32], strides = [1, 1]} : vector<128x32xbf16> to vector<1x32xbf16>
    %179 = vector.extract_strided_slice %8 {offsets = [68, 0], sizes = [1, 32], strides = [1, 1]} : vector<128x32xbf16> to vector<1x32xbf16>
    %180 = vector.extract_strided_slice %8 {offsets = [69, 0], sizes = [1, 32], strides = [1, 1]} : vector<128x32xbf16> to vector<1x32xbf16>
    %181 = vector.extract_strided_slice %8 {offsets = [75, 0], sizes = [1, 32], strides = [1, 1]} : vector<128x32xbf16> to vector<1x32xbf16>
    %182 = vector.extract_strided_slice %8 {offsets = [76, 0], sizes = [1, 32], strides = [1, 1]} : vector<128x32xbf16> to vector<1x32xbf16>
    %183 = vector.extract_strided_slice %8 {offsets = [77, 0], sizes = [1, 32], strides = [1, 1]} : vector<128x32xbf16> to vector<1x32xbf16>
    %184 = tpu.concatenate %10, %178, %179, %180, %181, %182, %183 in 1 : vector<1x96xbf16>, vector<1x32xbf16>, vector<1x32xbf16>, vector<1x32xbf16>, vector<1x32xbf16>, vector<1x32xbf16>, vector<1x32xbf16> -> vector<1x288xbf16>
    %c18 = arith.constant 18 : index
    %c0_27 = arith.constant 0 : index
    %185 = vector.load %arg10[%c18, %c0_27] : memref<32x288xbf16, #tpu.memory_space<vmem>>, vector<1x288xbf16>
    tpu.vector_store %arg10[%c18, %c0_27], %184 {strides = array<i32>} : memref<32x288xbf16, #tpu.memory_space<vmem>>, vector<1x288xbf16>,
    %186 = vector.extract_strided_slice %8 {offsets = [69, 0], sizes = [1, 32], strides = [1, 1]} : vector<128x32xbf16> to vector<1x32xbf16>
    %187 = vector.extract_strided_slice %8 {offsets = [70, 0], sizes = [1, 32], strides = [1, 1]} : vector<128x32xbf16> to vector<1x32xbf16>
    %188 = vector.extract_strided_slice %8 {offsets = [71, 0], sizes = [1, 32], strides = [1, 1]} : vector<128x32xbf16> to vector<1x32xbf16>
    %189 = vector.extract_strided_slice %8 {offsets = [77, 0], sizes = [1, 32], strides = [1, 1]} : vector<128x32xbf16> to vector<1x32xbf16>
    %190 = vector.extract_strided_slice %8 {offsets = [78, 0], sizes = [1, 32], strides = [1, 1]} : vector<128x32xbf16> to vector<1x32xbf16>
    %191 = vector.extract_strided_slice %8 {offsets = [79, 0], sizes = [1, 32], strides = [1, 1]} : vector<128x32xbf16> to vector<1x32xbf16>
    %192 = tpu.concatenate %10, %186, %187, %188, %189, %190, %191 in 1 : vector<1x96xbf16>, vector<1x32xbf16>, vector<1x32xbf16>, vector<1x32xbf16>, vector<1x32xbf16>, vector<1x32xbf16>, vector<1x32xbf16> -> vector<1x288xbf16>
    %c19 = arith.constant 19 : index
    %c0_28 = arith.constant 0 : index
    %193 = vector.load %arg10[%c19, %c0_28] : memref<32x288xbf16, #tpu.memory_space<vmem>>, vector<1x288xbf16>
    tpu.vector_store %arg10[%c19, %c0_28], %192 {strides = array<i32>} : memref<32x288xbf16, #tpu.memory_space<vmem>>, vector<1x288xbf16>,
    %194 = vector.extract_strided_slice %8 {offsets = [72, 0], sizes = [1, 32], strides = [1, 1]} : vector<128x32xbf16> to vector<1x32xbf16>
    %195 = vector.extract_strided_slice %8 {offsets = [73, 0], sizes = [1, 32], strides = [1, 1]} : vector<128x32xbf16> to vector<1x32xbf16>
    %196 = vector.extract_strided_slice %8 {offsets = [80, 0], sizes = [1, 32], strides = [1, 1]} : vector<128x32xbf16> to vector<1x32xbf16>
    %197 = vector.extract_strided_slice %8 {offsets = [81, 0], sizes = [1, 32], strides = [1, 1]} : vector<128x32xbf16> to vector<1x32xbf16>
    %198 = vector.extract_strided_slice %8 {offsets = [88, 0], sizes = [1, 32], strides = [1, 1]} : vector<128x32xbf16> to vector<1x32xbf16>
    %199 = vector.extract_strided_slice %8 {offsets = [89, 0], sizes = [1, 32], strides = [1, 1]} : vector<128x32xbf16> to vector<1x32xbf16>
    %200 = tpu.concatenate %9, %194, %195, %9, %196, %197, %9, %198, %199 in 1 : vector<1x32xbf16>, vector<1x32xbf16>, vector<1x32xbf16>, vector<1x32xbf16>, vector<1x32xbf16>, vector<1x32xbf16>, vector<1x32xbf16>, vector<1x32xbf16>, vector<1x32xbf16> -> vector<1x288xbf16>
    %c20 = arith.constant 20 : index
    %c0_29 = arith.constant 0 : index
    %201 = vector.load %arg10[%c20, %c0_29] : memref<32x288xbf16, #tpu.memory_space<vmem>>, vector<1x288xbf16>
    tpu.vector_store %arg10[%c20, %c0_29], %200 {strides = array<i32>} : memref<32x288xbf16, #tpu.memory_space<vmem>>, vector<1x288xbf16>,
    %202 = vector.extract_strided_slice %8 {offsets = [73, 0], sizes = [1, 32], strides = [1, 1]} : vector<128x32xbf16> to vector<1x32xbf16>
    %203 = vector.extract_strided_slice %8 {offsets = [74, 0], sizes = [1, 32], strides = [1, 1]} : vector<128x32xbf16> to vector<1x32xbf16>
    %204 = vector.extract_strided_slice %8 {offsets = [75, 0], sizes = [1, 32], strides = [1, 1]} : vector<128x32xbf16> to vector<1x32xbf16>
    %205 = vector.extract_strided_slice %8 {offsets = [81, 0], sizes = [1, 32], strides = [1, 1]} : vector<128x32xbf16> to vector<1x32xbf16>
    %206 = vector.extract_strided_slice %8 {offsets = [82, 0], sizes = [1, 32], strides = [1, 1]} : vector<128x32xbf16> to vector<1x32xbf16>
    %207 = vector.extract_strided_slice %8 {offsets = [83, 0], sizes = [1, 32], strides = [1, 1]} : vector<128x32xbf16> to vector<1x32xbf16>
    %208 = vector.extract_strided_slice %8 {offsets = [89, 0], sizes = [1, 32], strides = [1, 1]} : vector<128x32xbf16> to vector<1x32xbf16>
    %209 = vector.extract_strided_slice %8 {offsets = [90, 0], sizes = [1, 32], strides = [1, 1]} : vector<128x32xbf16> to vector<1x32xbf16>
    %210 = vector.extract_strided_slice %8 {offsets = [91, 0], sizes = [1, 32], strides = [1, 1]} : vector<128x32xbf16> to vector<1x32xbf16>
    %211 = tpu.concatenate %202, %203, %204, %205, %206, %207, %208, %209, %210 in 1 : vector<1x32xbf16>, vector<1x32xbf16>, vector<1x32xbf16>, vector<1x32xbf16>, vector<1x32xbf16>, vector<1x32xbf16>, vector<1x32xbf16>, vector<1x32xbf16>, vector<1x32xbf16> -> vector<1x288xbf16>
    %c21 = arith.constant 21 : index
    %c0_30 = arith.constant 0 : index
    %212 = vector.load %arg10[%c21, %c0_30] : memref<32x288xbf16, #tpu.memory_space<vmem>>, vector<1x288xbf16>
    tpu.vector_store %arg10[%c21, %c0_30], %211 {strides = array<i32>} : memref<32x288xbf16, #tpu.memory_space<vmem>>, vector<1x288xbf16>,
    %213 = vector.extract_strided_slice %8 {offsets = [75, 0], sizes = [1, 32], strides = [1, 1]} : vector<128x32xbf16> to vector<1x32xbf16>
    %214 = vector.extract_strided_slice %8 {offsets = [76, 0], sizes = [1, 32], strides = [1, 1]} : vector<128x32xbf16> to vector<1x32xbf16>
    %215 = vector.extract_strided_slice %8 {offsets = [77, 0], sizes = [1, 32], strides = [1, 1]} : vector<128x32xbf16> to vector<1x32xbf16>
    %216 = vector.extract_strided_slice %8 {offsets = [83, 0], sizes = [1, 32], strides = [1, 1]} : vector<128x32xbf16> to vector<1x32xbf16>
    %217 = vector.extract_strided_slice %8 {offsets = [84, 0], sizes = [1, 32], strides = [1, 1]} : vector<128x32xbf16> to vector<1x32xbf16>
    %218 = vector.extract_strided_slice %8 {offsets = [85, 0], sizes = [1, 32], strides = [1, 1]} : vector<128x32xbf16> to vector<1x32xbf16>
    %219 = vector.extract_strided_slice %8 {offsets = [91, 0], sizes = [1, 32], strides = [1, 1]} : vector<128x32xbf16> to vector<1x32xbf16>
    %220 = vector.extract_strided_slice %8 {offsets = [92, 0], sizes = [1, 32], strides = [1, 1]} : vector<128x32xbf16> to vector<1x32xbf16>
    %221 = vector.extract_strided_slice %8 {offsets = [93, 0], sizes = [1, 32], strides = [1, 1]} : vector<128x32xbf16> to vector<1x32xbf16>
    %222 = tpu.concatenate %213, %214, %215, %216, %217, %218, %219, %220, %221 in 1 : vector<1x32xbf16>, vector<1x32xbf16>, vector<1x32xbf16>, vector<1x32xbf16>, vector<1x32xbf16>, vector<1x32xbf16>, vector<1x32xbf16>, vector<1x32xbf16>, vector<1x32xbf16> -> vector<1x288xbf16>
    %c22 = arith.constant 22 : index
    %c0_31 = arith.constant 0 : index
    %223 = vector.load %arg10[%c22, %c0_31] : memref<32x288xbf16, #tpu.memory_space<vmem>>, vector<1x288xbf16>
    tpu.vector_store %arg10[%c22, %c0_31], %222 {strides = array<i32>} : memref<32x288xbf16, #tpu.memory_space<vmem>>, vector<1x288xbf16>,
    %224 = vector.extract_strided_slice %8 {offsets = [77, 0], sizes = [1, 32], strides = [1, 1]} : vector<128x32xbf16> to vector<1x32xbf16>
    %225 = vector.extract_strided_slice %8 {offsets = [78, 0], sizes = [1, 32], strides = [1, 1]} : vector<128x32xbf16> to vector<1x32xbf16>
    %226 = vector.extract_strided_slice %8 {offsets = [79, 0], sizes = [1, 32], strides = [1, 1]} : vector<128x32xbf16> to vector<1x32xbf16>
    %227 = vector.extract_strided_slice %8 {offsets = [85, 0], sizes = [1, 32], strides = [1, 1]} : vector<128x32xbf16> to vector<1x32xbf16>
    %228 = vector.extract_strided_slice %8 {offsets = [86, 0], sizes = [1, 32], strides = [1, 1]} : vector<128x32xbf16> to vector<1x32xbf16>
    %229 = vector.extract_strided_slice %8 {offsets = [87, 0], sizes = [1, 32], strides = [1, 1]} : vector<128x32xbf16> to vector<1x32xbf16>
    %230 = vector.extract_strided_slice %8 {offsets = [93, 0], sizes = [1, 32], strides = [1, 1]} : vector<128x32xbf16> to vector<1x32xbf16>
    %231 = vector.extract_strided_slice %8 {offsets = [94, 0], sizes = [1, 32], strides = [1, 1]} : vector<128x32xbf16> to vector<1x32xbf16>
    %232 = vector.extract_strided_slice %8 {offsets = [95, 0], sizes = [1, 32], strides = [1, 1]} : vector<128x32xbf16> to vector<1x32xbf16>
    %233 = tpu.concatenate %224, %225, %226, %227, %228, %229, %230, %231, %232 in 1 : vector<1x32xbf16>, vector<1x32xbf16>, vector<1x32xbf16>, vector<1x32xbf16>, vector<1x32xbf16>, vector<1x32xbf16>, vector<1x32xbf16>, vector<1x32xbf16>, vector<1x32xbf16> -> vector<1x288xbf16>
    %c23 = arith.constant 23 : index
    %c0_32 = arith.constant 0 : index
    %234 = vector.load %arg10[%c23, %c0_32] : memref<32x288xbf16, #tpu.memory_space<vmem>>, vector<1x288xbf16>
    tpu.vector_store %arg10[%c23, %c0_32], %233 {strides = array<i32>} : memref<32x288xbf16, #tpu.memory_space<vmem>>, vector<1x288xbf16>,
    %235 = vector.extract_strided_slice %8 {offsets = [88, 0], sizes = [1, 32], strides = [1, 1]} : vector<128x32xbf16> to vector<1x32xbf16>
    %236 = vector.extract_strided_slice %8 {offsets = [89, 0], sizes = [1, 32], strides = [1, 1]} : vector<128x32xbf16> to vector<1x32xbf16>
    %237 = vector.extract_strided_slice %8 {offsets = [96, 0], sizes = [1, 32], strides = [1, 1]} : vector<128x32xbf16> to vector<1x32xbf16>
    %238 = vector.extract_strided_slice %8 {offsets = [97, 0], sizes = [1, 32], strides = [1, 1]} : vector<128x32xbf16> to vector<1x32xbf16>
    %239 = vector.extract_strided_slice %8 {offsets = [104, 0], sizes = [1, 32], strides = [1, 1]} : vector<128x32xbf16> to vector<1x32xbf16>
    %240 = vector.extract_strided_slice %8 {offsets = [105, 0], sizes = [1, 32], strides = [1, 1]} : vector<128x32xbf16> to vector<1x32xbf16>
    %241 = tpu.concatenate %9, %235, %236, %9, %237, %238, %9, %239, %240 in 1 : vector<1x32xbf16>, vector<1x32xbf16>, vector<1x32xbf16>, vector<1x32xbf16>, vector<1x32xbf16>, vector<1x32xbf16>, vector<1x32xbf16>, vector<1x32xbf16>, vector<1x32xbf16> -> vector<1x288xbf16>
    %c24 = arith.constant 24 : index
    %c0_33 = arith.constant 0 : index
    %242 = vector.load %arg10[%c24, %c0_33] : memref<32x288xbf16, #tpu.memory_space<vmem>>, vector<1x288xbf16>
    tpu.vector_store %arg10[%c24, %c0_33], %241 {strides = array<i32>} : memref<32x288xbf16, #tpu.memory_space<vmem>>, vector<1x288xbf16>,
    %243 = vector.extract_strided_slice %8 {offsets = [89, 0], sizes = [1, 32], strides = [1, 1]} : vector<128x32xbf16> to vector<1x32xbf16>
    %244 = vector.extract_strided_slice %8 {offsets = [90, 0], sizes = [1, 32], strides = [1, 1]} : vector<128x32xbf16> to vector<1x32xbf16>
    %245 = vector.extract_strided_slice %8 {offsets = [91, 0], sizes = [1, 32], strides = [1, 1]} : vector<128x32xbf16> to vector<1x32xbf16>
    %246 = vector.extract_strided_slice %8 {offsets = [97, 0], sizes = [1, 32], strides = [1, 1]} : vector<128x32xbf16> to vector<1x32xbf16>
    %247 = vector.extract_strided_slice %8 {offsets = [98, 0], sizes = [1, 32], strides = [1, 1]} : vector<128x32xbf16> to vector<1x32xbf16>
    %248 = vector.extract_strided_slice %8 {offsets = [99, 0], sizes = [1, 32], strides = [1, 1]} : vector<128x32xbf16> to vector<1x32xbf16>
    %249 = vector.extract_strided_slice %8 {offsets = [105, 0], sizes = [1, 32], strides = [1, 1]} : vector<128x32xbf16> to vector<1x32xbf16>
    %250 = vector.extract_strided_slice %8 {offsets = [106, 0], sizes = [1, 32], strides = [1, 1]} : vector<128x32xbf16> to vector<1x32xbf16>
    %251 = vector.extract_strided_slice %8 {offsets = [107, 0], sizes = [1, 32], strides = [1, 1]} : vector<128x32xbf16> to vector<1x32xbf16>
    %252 = tpu.concatenate %243, %244, %245, %246, %247, %248, %249, %250, %251 in 1 : vector<1x32xbf16>, vector<1x32xbf16>, vector<1x32xbf16>, vector<1x32xbf16>, vector<1x32xbf16>, vector<1x32xbf16>, vector<1x32xbf16>, vector<1x32xbf16>, vector<1x32xbf16> -> vector<1x288xbf16>
    %c25 = arith.constant 25 : index
    %c0_34 = arith.constant 0 : index
    %253 = vector.load %arg10[%c25, %c0_34] : memref<32x288xbf16, #tpu.memory_space<vmem>>, vector<1x288xbf16>
    tpu.vector_store %arg10[%c25, %c0_34], %252 {strides = array<i32>} : memref<32x288xbf16, #tpu.memory_space<vmem>>, vector<1x288xbf16>,
    %254 = vector.extract_strided_slice %8 {offsets = [91, 0], sizes = [1, 32], strides = [1, 1]} : vector<128x32xbf16> to vector<1x32xbf16>
    %255 = vector.extract_strided_slice %8 {offsets = [92, 0], sizes = [1, 32], strides = [1, 1]} : vector<128x32xbf16> to vector<1x32xbf16>
    %256 = vector.extract_strided_slice %8 {offsets = [93, 0], sizes = [1, 32], strides = [1, 1]} : vector<128x32xbf16> to vector<1x32xbf16>
    %257 = vector.extract_strided_slice %8 {offsets = [99, 0], sizes = [1, 32], strides = [1, 1]} : vector<128x32xbf16> to vector<1x32xbf16>
    %258 = vector.extract_strided_slice %8 {offsets = [100, 0], sizes = [1, 32], strides = [1, 1]} : vector<128x32xbf16> to vector<1x32xbf16>
    %259 = vector.extract_strided_slice %8 {offsets = [101, 0], sizes = [1, 32], strides = [1, 1]} : vector<128x32xbf16> to vector<1x32xbf16>
    %260 = vector.extract_strided_slice %8 {offsets = [107, 0], sizes = [1, 32], strides = [1, 1]} : vector<128x32xbf16> to vector<1x32xbf16>
    %261 = vector.extract_strided_slice %8 {offsets = [108, 0], sizes = [1, 32], strides = [1, 1]} : vector<128x32xbf16> to vector<1x32xbf16>
    %262 = vector.extract_strided_slice %8 {offsets = [109, 0], sizes = [1, 32], strides = [1, 1]} : vector<128x32xbf16> to vector<1x32xbf16>
    %263 = tpu.concatenate %254, %255, %256, %257, %258, %259, %260, %261, %262 in 1 : vector<1x32xbf16>, vector<1x32xbf16>, vector<1x32xbf16>, vector<1x32xbf16>, vector<1x32xbf16>, vector<1x32xbf16>, vector<1x32xbf16>, vector<1x32xbf16>, vector<1x32xbf16> -> vector<1x288xbf16>
    %c26 = arith.constant 26 : index
    %c0_35 = arith.constant 0 : index
    %264 = vector.load %arg10[%c26, %c0_35] : memref<32x288xbf16, #tpu.memory_space<vmem>>, vector<1x288xbf16>
    tpu.vector_store %arg10[%c26, %c0_35], %263 {strides = array<i32>} : memref<32x288xbf16, #tpu.memory_space<vmem>>, vector<1x288xbf16>,
    %265 = vector.extract_strided_slice %8 {offsets = [93, 0], sizes = [1, 32], strides = [1, 1]} : vector<128x32xbf16> to vector<1x32xbf16>
    %266 = vector.extract_strided_slice %8 {offsets = [94, 0], sizes = [1, 32], strides = [1, 1]} : vector<128x32xbf16> to vector<1x32xbf16>
    %267 = vector.extract_strided_slice %8 {offsets = [95, 0], sizes = [1, 32], strides = [1, 1]} : vector<128x32xbf16> to vector<1x32xbf16>
    %268 = vector.extract_strided_slice %8 {offsets = [101, 0], sizes = [1, 32], strides = [1, 1]} : vector<128x32xbf16> to vector<1x32xbf16>
    %269 = vector.extract_strided_slice %8 {offsets = [102, 0], sizes = [1, 32], strides = [1, 1]} : vector<128x32xbf16> to vector<1x32xbf16>
    %270 = vector.extract_strided_slice %8 {offsets = [103, 0], sizes = [1, 32], strides = [1, 1]} : vector<128x32xbf16> to vector<1x32xbf16>
    %271 = vector.extract_strided_slice %8 {offsets = [109, 0], sizes = [1, 32], strides = [1, 1]} : vector<128x32xbf16> to vector<1x32xbf16>
    %272 = vector.extract_strided_slice %8 {offsets = [110, 0], sizes = [1, 32], strides = [1, 1]} : vector<128x32xbf16> to vector<1x32xbf16>
    %273 = vector.extract_strided_slice %8 {offsets = [111, 0], sizes = [1, 32], strides = [1, 1]} : vector<128x32xbf16> to vector<1x32xbf16>
    %274 = tpu.concatenate %265, %266, %267, %268, %269, %270, %271, %272, %273 in 1 : vector<1x32xbf16>, vector<1x32xbf16>, vector<1x32xbf16>, vector<1x32xbf16>, vector<1x32xbf16>, vector<1x32xbf16>, vector<1x32xbf16>, vector<1x32xbf16>, vector<1x32xbf16> -> vector<1x288xbf16>
    %c27 = arith.constant 27 : index
    %c0_36 = arith.constant 0 : index
    %275 = vector.load %arg10[%c27, %c0_36] : memref<32x288xbf16, #tpu.memory_space<vmem>>, vector<1x288xbf16>
    tpu.vector_store %arg10[%c27, %c0_36], %274 {strides = array<i32>} : memref<32x288xbf16, #tpu.memory_space<vmem>>, vector<1x288xbf16>,
    %276 = vector.extract_strided_slice %8 {offsets = [104, 0], sizes = [1, 32], strides = [1, 1]} : vector<128x32xbf16> to vector<1x32xbf16>
    %277 = vector.extract_strided_slice %8 {offsets = [105, 0], sizes = [1, 32], strides = [1, 1]} : vector<128x32xbf16> to vector<1x32xbf16>
    %278 = vector.extract_strided_slice %8 {offsets = [112, 0], sizes = [1, 32], strides = [1, 1]} : vector<128x32xbf16> to vector<1x32xbf16>
    %279 = vector.extract_strided_slice %8 {offsets = [113, 0], sizes = [1, 32], strides = [1, 1]} : vector<128x32xbf16> to vector<1x32xbf16>
    %280 = vector.extract_strided_slice %8 {offsets = [120, 0], sizes = [1, 32], strides = [1, 1]} : vector<128x32xbf16> to vector<1x32xbf16>
    %281 = vector.extract_strided_slice %8 {offsets = [121, 0], sizes = [1, 32], strides = [1, 1]} : vector<128x32xbf16> to vector<1x32xbf16>
    %282 = tpu.concatenate %9, %276, %277, %9, %278, %279, %9, %280, %281 in 1 : vector<1x32xbf16>, vector<1x32xbf16>, vector<1x32xbf16>, vector<1x32xbf16>, vector<1x32xbf16>, vector<1x32xbf16>, vector<1x32xbf16>, vector<1x32xbf16>, vector<1x32xbf16> -> vector<1x288xbf16>
    %c28 = arith.constant 28 : index
    %c0_37 = arith.constant 0 : index
    %283 = vector.load %arg10[%c28, %c0_37] : memref<32x288xbf16, #tpu.memory_space<vmem>>, vector<1x288xbf16>
    tpu.vector_store %arg10[%c28, %c0_37], %282 {strides = array<i32>} : memref<32x288xbf16, #tpu.memory_space<vmem>>, vector<1x288xbf16>,
    %284 = vector.extract_strided_slice %8 {offsets = [105, 0], sizes = [1, 32], strides = [1, 1]} : vector<128x32xbf16> to vector<1x32xbf16>
    %285 = vector.extract_strided_slice %8 {offsets = [106, 0], sizes = [1, 32], strides = [1, 1]} : vector<128x32xbf16> to vector<1x32xbf16>
    %286 = vector.extract_strided_slice %8 {offsets = [107, 0], sizes = [1, 32], strides = [1, 1]} : vector<128x32xbf16> to vector<1x32xbf16>
    %287 = vector.extract_strided_slice %8 {offsets = [113, 0], sizes = [1, 32], strides = [1, 1]} : vector<128x32xbf16> to vector<1x32xbf16>
    %288 = vector.extract_strided_slice %8 {offsets = [114, 0], sizes = [1, 32], strides = [1, 1]} : vector<128x32xbf16> to vector<1x32xbf16>
    %289 = vector.extract_strided_slice %8 {offsets = [115, 0], sizes = [1, 32], strides = [1, 1]} : vector<128x32xbf16> to vector<1x32xbf16>
    %290 = vector.extract_strided_slice %8 {offsets = [121, 0], sizes = [1, 32], strides = [1, 1]} : vector<128x32xbf16> to vector<1x32xbf16>
    %291 = vector.extract_strided_slice %8 {offsets = [122, 0], sizes = [1, 32], strides = [1, 1]} : vector<128x32xbf16> to vector<1x32xbf16>
    %292 = vector.extract_strided_slice %8 {offsets = [123, 0], sizes = [1, 32], strides = [1, 1]} : vector<128x32xbf16> to vector<1x32xbf16>
    %293 = tpu.concatenate %284, %285, %286, %287, %288, %289, %290, %291, %292 in 1 : vector<1x32xbf16>, vector<1x32xbf16>, vector<1x32xbf16>, vector<1x32xbf16>, vector<1x32xbf16>, vector<1x32xbf16>, vector<1x32xbf16>, vector<1x32xbf16>, vector<1x32xbf16> -> vector<1x288xbf16>
    %c29 = arith.constant 29 : index
    %c0_38 = arith.constant 0 : index
    %294 = vector.load %arg10[%c29, %c0_38] : memref<32x288xbf16, #tpu.memory_space<vmem>>, vector<1x288xbf16>
    tpu.vector_store %arg10[%c29, %c0_38], %293 {strides = array<i32>} : memref<32x288xbf16, #tpu.memory_space<vmem>>, vector<1x288xbf16>,
    %295 = vector.extract_strided_slice %8 {offsets = [107, 0], sizes = [1, 32], strides = [1, 1]} : vector<128x32xbf16> to vector<1x32xbf16>
    %296 = vector.extract_strided_slice %8 {offsets = [108, 0], sizes = [1, 32], strides = [1, 1]} : vector<128x32xbf16> to vector<1x32xbf16>
    %297 = vector.extract_strided_slice %8 {offsets = [109, 0], sizes = [1, 32], strides = [1, 1]} : vector<128x32xbf16> to vector<1x32xbf16>
    %298 = vector.extract_strided_slice %8 {offsets = [115, 0], sizes = [1, 32], strides = [1, 1]} : vector<128x32xbf16> to vector<1x32xbf16>
    %299 = vector.extract_strided_slice %8 {offsets = [116, 0], sizes = [1, 32], strides = [1, 1]} : vector<128x32xbf16> to vector<1x32xbf16>
    %300 = vector.extract_strided_slice %8 {offsets = [117, 0], sizes = [1, 32], strides = [1, 1]} : vector<128x32xbf16> to vector<1x32xbf16>
    %301 = vector.extract_strided_slice %8 {offsets = [123, 0], sizes = [1, 32], strides = [1, 1]} : vector<128x32xbf16> to vector<1x32xbf16>
    %302 = vector.extract_strided_slice %8 {offsets = [124, 0], sizes = [1, 32], strides = [1, 1]} : vector<128x32xbf16> to vector<1x32xbf16>
    %303 = vector.extract_strided_slice %8 {offsets = [125, 0], sizes = [1, 32], strides = [1, 1]} : vector<128x32xbf16> to vector<1x32xbf16>
    %304 = tpu.concatenate %295, %296, %297, %298, %299, %300, %301, %302, %303 in 1 : vector<1x32xbf16>, vector<1x32xbf16>, vector<1x32xbf16>, vector<1x32xbf16>, vector<1x32xbf16>, vector<1x32xbf16>, vector<1x32xbf16>, vector<1x32xbf16>, vector<1x32xbf16> -> vector<1x288xbf16>
    %c30 = arith.constant 30 : index
    %c0_39 = arith.constant 0 : index
    %305 = vector.load %arg10[%c30, %c0_39] : memref<32x288xbf16, #tpu.memory_space<vmem>>, vector<1x288xbf16>
    tpu.vector_store %arg10[%c30, %c0_39], %304 {strides = array<i32>} : memref<32x288xbf16, #tpu.memory_space<vmem>>, vector<1x288xbf16>,
    %306 = vector.extract_strided_slice %8 {offsets = [109, 0], sizes = [1, 32], strides = [1, 1]} : vector<128x32xbf16> to vector<1x32xbf16>
    %307 = vector.extract_strided_slice %8 {offsets = [110, 0], sizes = [1, 32], strides = [1, 1]} : vector<128x32xbf16> to vector<1x32xbf16>
    %308 = vector.extract_strided_slice %8 {offsets = [111, 0], sizes = [1, 32], strides = [1, 1]} : vector<128x32xbf16> to vector<1x32xbf16>
    %309 = vector.extract_strided_slice %8 {offsets = [117, 0], sizes = [1, 32], strides = [1, 1]} : vector<128x32xbf16> to vector<1x32xbf16>
    %310 = vector.extract_strided_slice %8 {offsets = [118, 0], sizes = [1, 32], strides = [1, 1]} : vector<128x32xbf16> to vector<1x32xbf16>
    %311 = vector.extract_strided_slice %8 {offsets = [119, 0], sizes = [1, 32], strides = [1, 1]} : vector<128x32xbf16> to vector<1x32xbf16>
    %312 = vector.extract_strided_slice %8 {offsets = [125, 0], sizes = [1, 32], strides = [1, 1]} : vector<128x32xbf16> to vector<1x32xbf16>
    %313 = vector.extract_strided_slice %8 {offsets = [126, 0], sizes = [1, 32], strides = [1, 1]} : vector<128x32xbf16> to vector<1x32xbf16>
    %314 = vector.extract_strided_slice %8 {offsets = [127, 0], sizes = [1, 32], strides = [1, 1]} : vector<128x32xbf16> to vector<1x32xbf16>
    %315 = tpu.concatenate %306, %307, %308, %309, %310, %311, %312, %313, %314 in 1 : vector<1x32xbf16>, vector<1x32xbf16>, vector<1x32xbf16>, vector<1x32xbf16>, vector<1x32xbf16>, vector<1x32xbf16>, vector<1x32xbf16>, vector<1x32xbf16>, vector<1x32xbf16> -> vector<1x288xbf16>
    %c31 = arith.constant 31 : index
    %c0_40 = arith.constant 0 : index
    %316 = vector.load %arg10[%c31, %c0_40] : memref<32x288xbf16, #tpu.memory_space<vmem>>, vector<1x288xbf16>
    tpu.vector_store %arg10[%c31, %c0_40], %315 {strides = array<i32>} : memref<32x288xbf16, #tpu.memory_space<vmem>>, vector<1x288xbf16>,
    %c0_41 = arith.constant 0 : index
    %c0_42 = arith.constant 0 : index
    %317 = vector.load %arg10[%c0_41, %c0_42] : memref<32x288xbf16, #tpu.memory_space<vmem>>, vector<32x288xbf16>
    %c0_43 = arith.constant 0 : index
    %c0_44 = arith.constant 0 : index
    %318 = vector.load %arg3[%c0_43, %c0_44] : memref<288x64xbf16, #tpu.memory_space<vmem>>, vector<288x64xbf16>
    %cst_45 = arith.constant dense<0.000000e+00> : vector<32x64xf32>
    %319 = tpu.matmul %317, %318, %cst_45 {dimension_numbers = #tpu.dot_dimension_numbers<[1], [0], [0], [1], [0, 0, 1, 1], [], []>} : vector<32x288xbf16>, vector<288x64xbf16>, vector<32x64xf32> -> vector<32x64xf32>
    %c0_46 = arith.constant 0 : index
    %c0_47 = arith.constant 0 : index
    %320 = vector.load %arg4[%c0_46, %c0_47] : memref<1x64xf32, #tpu.memory_space<vmem>>, vector<1x64xf32>
    %321 = vector.broadcast %320 : vector<1x64xf32> to vector<32x64xf32>
    %322 = arith.addf %319, %321 : vector<32x64xf32>
    %cst_48 = arith.constant 0.000000e+00 : f32
    %323 = vector.broadcast %cst_48 : f32 to vector<32x64xf32>
    %324 = arith.maximumf %322, %323 : vector<32x64xf32>
    %325 = vector.extract_strided_slice %324 {offsets = [0, 0], sizes = [16, 64], strides = [1, 1]} : vector<32x64xf32> to vector<16x64xf32>
    %cst_49 = arith.constant dense<0.000000e+00> : vector<64xf32>
    %326 = vector.multi_reduction <add>, %325, %cst_49 [0] : vector<16x64xf32> to vector<64xf32>
    %327 = vector.shape_cast %326 : vector<64xf32> to vector<1x64xf32>
    %cst_50 = arith.constant 1.600000e+01 : f32
    %328 = vector.broadcast %cst_50 : f32 to vector<1x64xf32>
    %329 = arith.divf %327, %328 : vector<1x64xf32>
    %330 = vector.extract_strided_slice %324 {offsets = [16, 0], sizes = [16, 64], strides = [1, 1]} : vector<32x64xf32> to vector<16x64xf32>
    %cst_51 = arith.constant dense<0.000000e+00> : vector<64xf32>
    %331 = vector.multi_reduction <add>, %330, %cst_51 [0] : vector<16x64xf32> to vector<64xf32>
    %332 = vector.shape_cast %331 : vector<64xf32> to vector<1x64xf32>
    %cst_52 = arith.constant 1.600000e+01 : f32
    %333 = vector.broadcast %cst_52 : f32 to vector<1x64xf32>
    %334 = arith.divf %332, %333 : vector<1x64xf32>
    %335 = tpu.concatenate %329, %334 in 0 : vector<1x64xf32>, vector<1x64xf32> -> vector<2x64xf32>
    %336 = arith.truncf %335 : vector<2x64xf32> to vector<2x64xbf16>
    %c0_53 = arith.constant 0 : index
    %c0_54 = arith.constant 0 : index
    %337 = vector.load %arg5[%c0_53, %c0_54] : memref<64x32xbf16, #tpu.memory_space<vmem>>, vector<64x32xbf16>
    %cst_55 = arith.constant dense<0.000000e+00> : vector<2x32xf32>
    %338 = tpu.matmul %336, %337, %cst_55 {dimension_numbers = #tpu.dot_dimension_numbers<[1], [0], [0], [1], [0, 0, 1, 1], [], []>} : vector<2x64xbf16>, vector<64x32xbf16>, vector<2x32xf32> -> vector<2x32xf32>
    %c0_56 = arith.constant 0 : index
    %c0_57 = arith.constant 0 : index
    %339 = vector.load %arg6[%c0_56, %c0_57] : memref<1x32xf32, #tpu.memory_space<vmem>>, vector<1x32xf32>
    %340 = vector.broadcast %339 : vector<1x32xf32> to vector<2x32xf32>
    %341 = arith.addf %338, %340 : vector<2x32xf32>
    %cst_58 = arith.constant 0.000000e+00 : f32
    %342 = vector.broadcast %cst_58 : f32 to vector<2x32xf32>
    %343 = arith.maximumf %341, %342 : vector<2x32xf32>
    %344 = arith.truncf %343 : vector<2x32xf32> to vector<2x32xbf16>
    %c0_59 = arith.constant 0 : index
    %c0_60 = arith.constant 0 : index
    %345 = vector.load %arg7[%c0_59, %c0_60] : memref<32x10xbf16, #tpu.memory_space<vmem>>, vector<32x10xbf16>
    %cst_61 = arith.constant dense<0.000000e+00> : vector<2x10xf32>
    %346 = tpu.matmul %344, %345, %cst_61 {dimension_numbers = #tpu.dot_dimension_numbers<[1], [0], [0], [1], [0, 0, 1, 1], [], []>} : vector<2x32xbf16>, vector<32x10xbf16>, vector<2x10xf32> -> vector<2x10xf32>
    %c0_62 = arith.constant 0 : index
    %c0_63 = arith.constant 0 : index
    %347 = vector.load %arg8[%c0_62, %c0_63] : memref<1x10xf32, #tpu.memory_space<vmem>>, vector<1x10xf32>
    %348 = vector.broadcast %347 : vector<1x10xf32> to vector<2x10xf32>
    %349 = arith.addf %346, %348 : vector<2x10xf32>
    %c0_64 = arith.constant 0 : index
    %c0_65 = arith.constant 0 : index
    %350 = vector.load %arg9[%c0_64, %c0_65] : memref<2x10xf32, #tpu.memory_space<vmem>>, vector<2x10xf32>
    tpu.vector_store %arg9[%c0_64, %c0_65], %349 {strides = array<i32>} : memref<2x10xf32, #tpu.memory_space<vmem>>, vector<2x10xf32>,
    return
  }
}

</mosaic_0001>

<llo_original>
// kernel: parent_model_simpleconv_forward.1
$region0: #{parent_model_simpleconv_forward.1}
  #allocation0 [shape = 'u32[]', space=smem, size = 0x4, offset = 0x4, fixed_abs, tag = 'smem constant byte address 0x4 - core index']
  #allocation1 [shape = 'u32[72,128]{1,0:T(1,128)}', space=vmem, size = 0x9000, scoped, tag = 'internal scratch']
  #allocation2 [shape = 'bf16[32,288]{1,0:T(8,128)(2,1)}', space=vmem, size = 0x6000, scoped, tag = 'scratch operand']
  %s0 = inlined_call_operand.vmem [shape: bf16[128,48], index: 0, kind: input, shape index: {}]
  %s1 = inlined_call_operand.vmem [shape: bf16[48,32], index: 1, kind: input, shape index: {}]
  %s2 = inlined_call_operand.vmem [shape: f32[1,32], index: 2, kind: input, shape index: {}]
  %s3 = inlined_call_operand.vmem [shape: bf16[288,64], index: 3, kind: input, shape index: {}]
  %s4 = inlined_call_operand.vmem [shape: f32[1,64], index: 4, kind: input, shape index: {}]
  %s5 = inlined_call_operand.vmem [shape: bf16[64,32], index: 5, kind: input, shape index: {}]
  %s6 = inlined_call_operand.vmem [shape: f32[1,32], index: 6, kind: input, shape index: {}]
  %s7 = inlined_call_operand.vmem [shape: bf16[32,10], index: 7, kind: input, shape index: {}]
  %s8 = inlined_call_operand.vmem [shape: f32[1,10], index: 8, kind: input, shape index: {}]
  %s9 = inlined_call_operand.hbm [shape: f32[2,10], index: 9, kind: output, shape index: {}]
  %s10 = sld [smem:[#allocation0]]
  $region46: #{parent_model_simpleconv_forward.1} parent=0
    _
  %s12 = ssub.s32 1, %s10
  %s13 = scalar_select 0, %s12, %s10
  $region1: #{parent_model_simpleconv_forward.1} parent=0
    #allocation3 [shape = 'u8[1024]{0}', space=vmem, size = 0x400, scoped, tag = 'output window, operand 0, single buffered']
    #allocation4 [shape = 's32[1]{0}', space=sflag, size = 0x4, scoped, tag = 'scoped memory for parent_model_simpleconv_forward.1']
    %14 = vsyncpa [#allocation4], 0
    // Predicated region
    $region2: #{parent_model_simpleconv_forward.1} parent=1 // pred_check
      _
    $region3: #{parent_model_simpleconv_forward.1} parent=1 // pred_check_branch
      %16 = sbr.rel (0) target = $region5
    $region4: #{parent_model_simpleconv_forward.1} parent=1 // pred_region
      _
    $region5: #{parent_model_simpleconv_forward.1} parent=1 // pred_fallthru
      _
    // Predicated region
    $region6: #{parent_model_simpleconv_forward.1} parent=1 // pred_check
      _
    $region7: #{parent_model_simpleconv_forward.1} parent=1 // pred_check_branch
      %18 = sbr.rel (0) target = $region9
    $region8: #{parent_model_simpleconv_forward.1} parent=1 // pred_region
      _
    $region9: #{parent_model_simpleconv_forward.1} parent=1 // pred_fallthru
      _
    // Predicated region
    $region10: #{parent_model_simpleconv_forward.1} parent=1 // pred_check
      _
    $region11: #{parent_model_simpleconv_forward.1} parent=1 // pred_check_branch
      %20 = sbr.rel (0) target = $region13
    $region12: #{parent_model_simpleconv_forward.1} parent=1 // pred_region
      _
    $region13: #{parent_model_simpleconv_forward.1} parent=1 // pred_fallthru
      _
    // Predicated region
    $region14: #{parent_model_simpleconv_forward.1} parent=1 // pred_check
      _
    $region15: #{parent_model_simpleconv_forward.1} parent=1 // pred_check_branch
      %22 = sbr.rel (0) target = $region17
    $region16: #{parent_model_simpleconv_forward.1} parent=1 // pred_region
      _
    $region17: #{parent_model_simpleconv_forward.1} parent=1 // pred_fallthru
      _
    // Predicated region
    $region18: #{parent_model_simpleconv_forward.1} parent=1 // pred_check
      _
    $region19: #{parent_model_simpleconv_forward.1} parent=1 // pred_check_branch
      %24 = sbr.rel (0) target = $region21
    $region20: #{parent_model_simpleconv_forward.1} parent=1 // pred_region
      _
    $region21: #{parent_model_simpleconv_forward.1} parent=1 // pred_fallthru
      _
    // Predicated region
    $region22: #{parent_model_simpleconv_forward.1} parent=1 // pred_check
      _
    $region23: #{parent_model_simpleconv_forward.1} parent=1 // pred_check_branch
      %26 = sbr.rel (0) target = $region25
    $region24: #{parent_model_simpleconv_forward.1} parent=1 // pred_region
      _
    $region25: #{parent_model_simpleconv_forward.1} parent=1 // pred_fallthru
      _
    // Predicated region
    $region26: #{parent_model_simpleconv_forward.1} parent=1 // pred_check
      _
    $region27: #{parent_model_simpleconv_forward.1} parent=1 // pred_check_branch
      %28 = sbr.rel (0) target = $region29
    $region28: #{parent_model_simpleconv_forward.1} parent=1 // pred_region
      _
    $region29: #{parent_model_simpleconv_forward.1} parent=1 // pred_fallthru
      _
    // Predicated region
    $region30: #{parent_model_simpleconv_forward.1} parent=1 // pred_check
      _
    $region31: #{parent_model_simpleconv_forward.1} parent=1 // pred_check_branch
      %30 = sbr.rel (0) target = $region33
    $region32: #{parent_model_simpleconv_forward.1} parent=1 // pred_region
      _
    $region33: #{parent_model_simpleconv_forward.1} parent=1 // pred_fallthru
      _
    // Predicated region
    $region34: #{parent_model_simpleconv_forward.1} parent=1 // pred_check
      _
    $region35: #{parent_model_simpleconv_forward.1} parent=1 // pred_check_branch
      %32 = sbr.rel (0) target = $region37
    $region36: #{parent_model_simpleconv_forward.1} parent=1 // pred_region
      _
    $region37: #{parent_model_simpleconv_forward.1} parent=1 // pred_fallthru
      _
    %v34 = vld [vmem:[%s0] sm:$0xf]
    %v35 = vld [vmem:[%s0 + $0x4] sm:$0xf]
    %v36 = vld [vmem:[%s0 + $0x8] sm:$0xf]
    %v37 = vld [vmem:[%s0 + $0xc] sm:$0xf]
    %v38 = vld [vmem:[%s0 + $0x10] sm:$0xf]
    %v39 = vld [vmem:[%s0 + $0x14] sm:$0xf]
    %v40 = vld [vmem:[%s0 + $0x18] sm:$0xf]
    %v41 = vld [vmem:[%s0 + $0x1c] sm:$0xf]
    %v42 = vld [vmem:[%s0 + $0x20] sm:$0xf]
    %v43 = vld [vmem:[%s0 + $0x24] sm:$0xf]
    %v44 = vld [vmem:[%s0 + $0x28] sm:$0xf]
    %v45 = vld [vmem:[%s0 + $0x2c] sm:$0xf]
    %v46 = vld [vmem:[%s0 + $0x30] sm:$0xf]
    %v47 = vld [vmem:[%s0 + $0x34] sm:$0xf]
    %v48 = vld [vmem:[%s0 + $0x38] sm:$0xf]
    %v49 = vld [vmem:[%s0 + $0x3c] sm:$0xf]
    %v50 = vld [vmem:[%s1] sm:$0xf]
    %v51 = vld [vmem:[%s1 + $0x4] sm:$0xf]
    %v52 = vld [vmem:[%s1 + $0x8] sm:$0xf]
    %v53 = vld [vmem:[%s1 + $0xc] sm:$0xf]
    %v54 = vld [vmem:[%s1 + $0x10] sm:$0xf]
    %v55 = vld [vmem:[%s1 + $0x14] sm:$0xf]
    %v56 = vld [vmem:[%s2] sm:$0x1]
    %v58 = vperm.slane %v56, 0
    %v76 = vunpack.c.l.b16 %v34
    %v77 = vunpack.c.l.b16 %v35
    %v78 = vunpack.c.l.b16 %v36
    %v79 = vunpack.c.l.b16 %v37
    %v80 = vunpack.c.l.b16 %v38
    %v81 = vunpack.c.l.b16 %v39
    %v82 = vunpack.c.l.b16 %v40
    %v83 = vunpack.c.l.b16 %v41
    %v84 = vunpack.c.l.b16 %v42
    %v85 = vunpack.c.l.b16 %v43
    %v86 = vunpack.c.l.b16 %v44
    %v87 = vunpack.c.l.b16 %v45
    %v88 = vunpack.c.l.b16 %v46
    %v89 = vunpack.c.l.b16 %v47
    %v90 = vunpack.c.l.b16 %v48
    %v91 = vunpack.c.l.b16 %v49
    %v92 = vpack.c.b16 %v77, %v76
    %v93 = vpack.c.b16 %v79, %v78
    %v94 = vpack.c.b16 %v81, %v80
    %v95 = vpack.c.b16 %v83, %v82
    %v96 = vpack.c.b16 %v85, %v84
    %v97 = vpack.c.b16 %v87, %v86
    %v98 = vpack.c.b16 %v89, %v88
    %v99 = vpack.c.b16 %v91, %v90
    %v106 = vunpack.c.l.b16 %v50
    %v107 = vunpack.c.l.b16 %v51
    %v108 = vunpack.c.l.b16 %v52
    %v109 = vunpack.c.l.b16 %v53
    %v110 = vunpack.c.l.b16 %v54
    %v111 = vunpack.c.l.b16 %v55
    %v112 = vpack.c.b16 %v107, %v106
    %v113 = vpack.c.b16 %v109, %v108
    %v114 = vpack.c.b16 %v111, %v110
    %vm118 = vcmask 392192
    %v120 = vsel %vm118, %v92, 0
    %v123 = vsel %vm118, %v93, 0
    %v126 = vsel %vm118, %v94, 0
    %v129 = vsel %vm118, %v95, 0
    %v132 = vsel %vm118, %v96, 0
    %v135 = vsel %vm118, %v97, 0
    %v138 = vsel %vm118, %v98, 0
    %v141 = vsel %vm118, %v99, 0
    %143 = vmatpush.bf16.msra.mxu0 0
    %144 = vmatpush.bf16.msra.mxu0 0
    %145 = vmatpush.bf16.msra.mxu0 0
    %146 = vmatpush.bf16.msra.mxu0 0
    %147 = vmatpush.bf16.msra.mxu0 0
    %148 = vmatpush.bf16.msra.mxu0 %v114
    %149 = vmatpush.bf16.msra.mxu0 %v113
    %150 = vmatpush.bf16.msra.mxu0 %v112
    %151 = vmatmul.bf16.gmra.mxu0 %v120
    %v152 = vpop.f32.mrf.mxu0
    %v153 = vadd.f32 %v58, %v152
    %v154 = vpop.f32.mrf.mxu0
    %v155 = vadd.f32 %v58, %v154
    %156 = vmatmul.bf16.gmra.mxu0 %v123
    %v157 = vpop.f32.mrf.mxu0
    %v158 = vadd.f32 %v58, %v157
    %v159 = vpop.f32.mrf.mxu0
    %v160 = vadd.f32 %v58, %v159
    %161 = vmatmul.bf16.gmra.mxu0 %v126
    %v162 = vpop.f32.mrf.mxu0
    %v163 = vadd.f32 %v58, %v162
    %v164 = vpop.f32.mrf.mxu0
    %v165 = vadd.f32 %v58, %v164
    %166 = vmatmul.bf16.gmra.mxu0 %v129
    %v167 = vpop.f32.mrf.mxu0
    %v168 = vadd.f32 %v58, %v167
    %v169 = vpop.f32.mrf.mxu0
    %v170 = vadd.f32 %v58, %v169
    %171 = vmatmul.bf16.gmra.mxu0 %v132
    %v172 = vpop.f32.mrf.mxu0
    %v173 = vadd.f32 %v58, %v172
    %v174 = vpop.f32.mrf.mxu0
    %v175 = vadd.f32 %v58, %v174
    %176 = vmatmul.bf16.gmra.mxu0 %v135
    %v177 = vpop.f32.mrf.mxu0
    %v178 = vadd.f32 %v58, %v177
    %v179 = vpop.f32.mrf.mxu0
    %v180 = vadd.f32 %v58, %v179
    %181 = vmatmul.bf16.gmra.mxu0 %v138
    %v182 = vpop.f32.mrf.mxu0
    %v183 = vadd.f32 %v58, %v182
    %v184 = vpop.f32.mrf.mxu0
    %v185 = vadd.f32 %v58, %v184
    %186 = vmatmul.bf16.gmra.mxu0 %v141
    %v187 = vpop.f32.mrf.mxu0
    %v188 = vadd.f32 %v58, %v187
    %v189 = vpop.f32.mrf.mxu0
    %v190 = vadd.f32 %v58, %v189
    %191 = vdwg.mxu0
    %v192 = vmax.f32 %v153, 0.0
    %v193 = vmax.f32 %v155, 0.0
    %v194 = vmax.f32 %v158, 0.0
    %v195 = vmax.f32 %v160, 0.0
    %v196 = vmax.f32 %v163, 0.0
    %v197 = vmax.f32 %v165, 0.0
    %v198 = vmax.f32 %v168, 0.0
    %v199 = vmax.f32 %v170, 0.0
    %v200 = vmax.f32 %v173, 0.0
    %v201 = vmax.f32 %v175, 0.0
    %v202 = vmax.f32 %v178, 0.0
    %v203 = vmax.f32 %v180, 0.0
    %v204 = vmax.f32 %v183, 0.0
    %v205 = vmax.f32 %v185, 0.0
    %v206 = vmax.f32 %v188, 0.0
    %v207 = vmax.f32 %v190, 0.0
    %v208 = vpack.c.bf16 %v192, %v192
    %v209 = vpack.c.bf16 %v193, %v193
    %v210 = vpack.c.bf16 %v194, %v194
    %v211 = vpack.c.bf16 %v195, %v195
    %v212 = vpack.c.bf16 %v196, %v196
    %v213 = vpack.c.bf16 %v197, %v197
    %v214 = vpack.c.bf16 %v198, %v198
    %v215 = vpack.c.bf16 %v199, %v199
    %v216 = vpack.c.bf16 %v200, %v200
    %v217 = vpack.c.bf16 %v201, %v201
    %v218 = vpack.c.bf16 %v202, %v202
    %v219 = vpack.c.bf16 %v203, %v203
    %v220 = vpack.c.bf16 %v204, %v204
    %v221 = vpack.c.bf16 %v205, %v205
    %v222 = vpack.c.bf16 %v206, %v206
    %v223 = vpack.c.bf16 %v207, %v207
    %v225 = vunpack.c.l.b16 %v208
    %v226 = vpack.c.b16 %v225, %v225
    %v228 = vshrl.u32 %v226, 16
    %230 = vrot.lane.b32.xlu0 %v228, 32
    %v231 = vpop.permute.xlu0 %230
    %v233 = vunpack.c.l.b16 %v209
    %v234 = vpack.c.b16 %v233, %v233
    %235 = vrot.lane.b32.xlu0 %v234, 96
    %v236 = vpop.permute.xlu0 %235
    %v238 = vshrl.u32 %v234, 16
    %vm240 = vcmask 785408
    %vm242 = vcmask 261120
    %v245 = vsel %vm242, %v208, %v231
    %vm246 = vcmask 523264
    %v247 = vsel %vm246, %v245, 0
    %v249 = vsel %vm240, %v247, %v236
    %v252 = vunpack.c.l.b16 0
    %v253 = vunpack.c.l.b16 %v249
    %v254 = vunpack.c.l.b16 %v238
    %v255 = vpack.c.b16 %v253, %v252
    %v256 = vpack.c.b16 %v254, %v254
    %vm259 = vcmask 1040384
    %vm260 = vsmask.f32 256
    %vm261 = vmand %vm259, %vm260
    %vm262 = vcmask 1044484
    %vm263 = vsmask.f32 4352
    %vm264 = vmand %vm262, %vm263
    %vm265 = vmor %vm264, %vm261
    %v266 = vld [vmem:[#allocation2] sm:$0x11]
    %v267 = vsel %vm265, %v255, %v266
    %268 = vst [vmem:[#allocation2] sm:$0x11] %v267
    %vm269 = vcmask 253952
    %vm270 = vmand %vm269, %vm260
    %v271 = vld [vmem:[#allocation2 + $0x8] sm:$0x1]
    %v272 = vsel %vm270, %v256, %v271
    %273 = vst [vmem:[#allocation2 + $0x8] sm:$0x1] %v272
    %274 = vrot.lane.b32.xlu0 %v228, 96
    %v275 = vpop.permute.xlu0 %274
    %v276 = vrot.slane %v226, 1
    %v277 = vrot.slane %v228, 1
    %278 = vrot.lane.b32.xlu0 %v277, 32
    %v279 = vpop.permute.xlu0 %278
    %280 = vrot.lane.b32.xlu0 %v238, 64
    %v281 = vpop.permute.xlu0 %280
    %v282 = vrot.slane %v234, 1
    %283 = vrot.lane.b32.xlu0 %v282, 96
    %v284 = vpop.permute.xlu0 %283
    %v285 = vrot.slane %v238, 1
    %v287 = vsel %vm240, 0, %v275
    %v290 = vsel %vm242, %v276, %v279
    %v292 = vsel %vm246, %v290, %v281
    %v294 = vsel %vm240, %v292, %v284
    %v297 = vunpack.c.l.b16 %v287
    %v298 = vunpack.c.l.b16 %v294
    %v299 = vunpack.c.l.b16 %v285
    %v300 = vpack.c.b16 %v298, %v297
    %v301 = vpack.c.b16 %v299, %v299
    %v303 = vshll.u32 %v300, 16
    %v306 = vshll.u32 %v301, 16
    %vm310 = vsmask.f32 7938
    %vm311 = vmand %vm259, %vm310
    %vm312 = vsmask.f32 7954
    %vm313 = vmand %vm262, %vm312
    %vm314 = vmor %vm313, %vm311
    %v315 = vld [vmem:[#allocation2] sm:$0x11]
    %v316 = vsel %vm314, %v303, %v315
    %317 = vst [vmem:[#allocation2] sm:$0x11] %v316
    %vm318 = vmand %vm269, %vm310
    %v319 = vld [vmem:[#allocation2 + $0x8] sm:$0x1]
    %v320 = vsel %vm318, %v306, %v319
    %321 = vst [vmem:[#allocation2 + $0x8] sm:$0x1] %v320
    %322 = vrot.lane.b32.xlu0 %v277, 96
    %v323 = vpop.permute.xlu0 %322
    %v324 = vrot.slane %v226, 2
    %v325 = vrot.slane %v228, 2
    %326 = vrot.lane.b32.xlu0 %v325, 32
    %v327 = vpop.permute.xlu0 %326
    %328 = vrot.lane.b32.xlu0 %v285, 64
    %v329 = vpop.permute.xlu0 %328
    %v330 = vrot.slane %v234, 2
    %331 = vrot.lane.b32.xlu0 %v330, 96
    %v332 = vpop.permute.xlu0 %331
    %v333 = vrot.slane %v238, 2
    %v335 = vsel %vm240, 0, %v323
    %v338 = vsel %vm242, %v324, %v327
    %v340 = vsel %vm246, %v338, %v329
    %v342 = vsel %vm240, %v340, %v332
    %v345 = vunpack.c.l.b16 %v335
    %v346 = vunpack.c.l.b16 %v342
    %v347 = vunpack.c.l.b16 %v333
    %v348 = vpack.c.b16 %v346, %v345
    %v349 = vpack.c.b16 %v347, %v347
    %v350 = vrot.slane %v348, 7
    %v351 = vrot.slane %v349, 7
    %vm354 = vcmask 1041409
    %vm355 = vsmask.f32 1280
    %vm356 = vmand %vm354, %vm355
    %vm357 = vcmask 1045509
    %vm358 = vsmask.f32 5376
    %vm359 = vmand %vm357, %vm358
    %vm360 = vmor %vm359, %vm356
    %v361 = vld [vmem:[#allocation2] sm:$0x22]
    %v362 = vsel %vm360, %v350, %v361
    %363 = vst [vmem:[#allocation2] sm:$0x22] %v362
    %vm364 = vcmask 254977
    %vm365 = vmand %vm364, %vm355
    %v366 = vld [vmem:[#allocation2 + $0x8] sm:$0x2]
    %v367 = vsel %vm365, %v351, %v366
    %368 = vst [vmem:[#allocation2 + $0x8] sm:$0x2] %v367
    %369 = vrot.lane.b32.xlu0 %v325, 96
    %v370 = vpop.permute.xlu0 %369
    %v371 = vrot.slane %v226, 3
    %v372 = vrot.slane %v228, 3
    %373 = vrot.lane.b32.xlu0 %v372, 32
    %v374 = vpop.permute.xlu0 %373
    %375 = vrot.lane.b32.xlu0 %v333, 64
    %v376 = vpop.permute.xlu0 %375
    %v377 = vrot.slane %v234, 3
    %378 = vrot.lane.b32.xlu0 %v377, 96
    %v379 = vpop.permute.xlu0 %378
    %v380 = vrot.slane %v238, 3
    %v382 = vsel %vm240, 0, %v370
    %v385 = vsel %vm242, %v371, %v374
    %v387 = vsel %vm246, %v385, %v376
    %v389 = vsel %vm240, %v387, %v379
    %v392 = vunpack.c.l.b16 %v382
    %v393 = vunpack.c.l.b16 %v389
    %v394 = vunpack.c.l.b16 %v380
    %v395 = vpack.c.b16 %v393, %v392
    %v396 = vpack.c.b16 %v394, %v394
    %v398 = vshll.u32 %v395, 16
    %v400 = vrot.slane %v398, 7
    %v402 = vshll.u32 %v396, 16
    %v404 = vrot.slane %v402, 7
    %vm407 = vsmask.f32 7942
    %vm408 = vmand %vm354, %vm407
    %vm409 = vsmask.f32 7958
    %vm410 = vmand %vm357, %vm409
    %vm411 = vmor %vm410, %vm408
    %v412 = vld [vmem:[#allocation2] sm:$0x22]
    %v413 = vsel %vm411, %v400, %v412
    %414 = vst [vmem:[#allocation2] sm:$0x22] %v413
    %vm415 = vmand %vm364, %vm407
    %v416 = vld [vmem:[#allocation2 + $0x8] sm:$0x2]
    %v417 = vsel %vm415, %v404, %v416
    %418 = vst [vmem:[#allocation2 + $0x8] sm:$0x2] %v417
    %419 = vrot.lane.b32.xlu0 %v234, 32
    %v420 = vpop.permute.xlu0 %419
    %v422 = vunpack.c.l.b16 %v210
    %v423 = vpack.c.b16 %v422, %v422
    %v425 = vshrl.u32 %v423, 16
    %427 = vrot.lane.b32.xlu0 %v425, 32
    %v428 = vpop.permute.xlu0 %427
    %v430 = vunpack.c.l.b16 %v211
    %v431 = vpack.c.b16 %v430, %v430
    %432 = vrot.lane.b32.xlu0 %v431, 96
    %v433 = vpop.permute.xlu0 %432
    %v435 = vshrl.u32 %v431, 16
    %v438 = vsel %vm242, 0, %v420
    %v439 = vsel %vm246, %v438, %v281
    %v440 = vsel %vm240, %v439, 0
    %v443 = vsel %vm242, %v210, %v428
    %v444 = vsel %vm246, %v443, 0
    %v446 = vsel %vm240, %v444, %v433
    %v449 = vunpack.c.l.b16 %v440
    %v450 = vunpack.c.l.b16 %v446
    %v451 = vunpack.c.l.b16 %v435
    %v452 = vpack.c.b16 %v450, %v449
    %v453 = vpack.c.b16 %v451, %v451
    %v454 = vrot.slane %v452, 6
    %v455 = vrot.slane %v453, 6
    %vm458 = vcmask 1042434
    %vm459 = vsmask.f32 2304
    %vm460 = vmand %vm458, %vm459
    %vm461 = vcmask 1046534
    %vm462 = vsmask.f32 6400
    %vm463 = vmand %vm461, %vm462
    %vm464 = vmor %vm463, %vm460
    %v465 = vld [vmem:[#allocation2] sm:$0x44]
    %v466 = vsel %vm464, %v454, %v465
    %467 = vst [vmem:[#allocation2] sm:$0x44] %v466
    %vm468 = vcmask 256002
    %vm469 = vmand %vm468, %vm459
    %v470 = vld [vmem:[#allocation2 + $0x8] sm:$0x4]
    %v471 = vsel %vm469, %v455, %v470
    %472 = vst [vmem:[#allocation2 + $0x8] sm:$0x4] %v471
    %v473 = vshll.u32 %v234, 16
    %v475 = vrot.slane %v473, 1
    %476 = vrot.lane.b32.xlu0 %v475, 32
    %v477 = vpop.permute.xlu0 %476
    %478 = vrot.lane.b32.xlu0 %v282, 64
    %v479 = vpop.permute.xlu0 %478
    %480 = vrot.lane.b32.xlu0 %v423, 96
    %v481 = vpop.permute.xlu0 %480
    %v482 = vshll.u32 %v423, 16
    %v484 = vrot.slane %v482, 1
    %v485 = vrot.slane %v423, 1
    %486 = vrot.lane.b32.xlu0 %v485, 32
    %v487 = vpop.permute.xlu0 %486
    %488 = vrot.lane.b32.xlu0 %v431, 64
    %v489 = vpop.permute.xlu0 %488
    %v490 = vshll.u32 %v431, 16
    %v492 = vrot.slane %v490, 1
    %493 = vrot.lane.b32.xlu0 %v492, 96
    %v494 = vpop.permute.xlu0 %493
    %v495 = vrot.slane %v431, 1
    %v498 = vsel %vm242, %v209, %v477
    %v500 = vsel %vm246, %v498, %v479
    %v502 = vsel %vm240, %v500, %v481
    %v505 = vsel %vm242, %v484, %v487
    %v507 = vsel %vm246, %v505, %v489
    %v509 = vsel %vm240, %v507, %v494
    %v512 = vunpack.c.l.b16 %v502
    %v513 = vunpack.c.l.b16 %v509
    %v514 = vunpack.c.l.b16 %v495
    %v515 = vpack.c.b16 %v513, %v512
    %v516 = vpack.c.b16 %v514, %v514
    %v517 = vrot.slane %v515, 6
    %v518 = vrot.slane %v516, 6
    %vm521 = vsmask.f32 7946
    %vm522 = vmand %vm458, %vm521
    %vm523 = vsmask.f32 7962
    %vm524 = vmand %vm461, %vm523
    %vm525 = vmor %vm524, %vm522
    %v526 = vld [vmem:[#allocation2] sm:$0x44]
    %v527 = vsel %vm525, %v517, %v526
    %528 = vst [vmem:[#allocation2] sm:$0x44] %v527
    %vm529 = vmand %vm468, %vm521
    %v530 = vld [vmem:[#allocation2 + $0x8] sm:$0x4]
    %v531 = vsel %vm529, %v518, %v530
    %532 = vst [vmem:[#allocation2 + $0x8] sm:$0x4] %v531
    %v534 = vshrl.u32 %v515, 16
    %v536 = vrot.slane %v534, 6
    %v538 = vshrl.u32 %v516, 16
    %v540 = vrot.slane %v538, 6
    %vm543 = vcmask 1043459
    %vm544 = vsmask.f32 3328
    %vm545 = vmand %vm543, %vm544
    %vm546 = vcmask 1047559
    %vm547 = vsmask.f32 7424
    %vm548 = vmand %vm546, %vm547
    %vm549 = vmor %vm548, %vm545
    %v550 = vld [vmem:[#allocation2] sm:$0x88]
    %v551 = vsel %vm549, %v536, %v550
    %552 = vst [vmem:[#allocation2] sm:$0x88] %v551
    %vm553 = vcmask 257027
    %vm554 = vmand %vm553, %vm544
    %v555 = vld [vmem:[#allocation2 + $0x8] sm:$0x8]
    %v556 = vsel %vm554, %v540, %v555
    %557 = vst [vmem:[#allocation2 + $0x8] sm:$0x8] %v556
    %v558 = vrot.slane %v515, 7
    %v559 = vrot.slane %v516, 7
    %vm562 = vsmask.f32 7950
    %vm563 = vmand %vm543, %vm562
    %vm564 = vsmask.f32 7966
    %vm565 = vmand %vm546, %vm564
    %vm566 = vmor %vm565, %vm563
    %v567 = vld [vmem:[#allocation2] sm:$0x88]
    %v568 = vsel %vm566, %v558, %v567
    %569 = vst [vmem:[#allocation2] sm:$0x88] %v568
    %vm570 = vmand %vm553, %vm562
    %v571 = vld [vmem:[#allocation2 + $0x8] sm:$0x8]
    %v572 = vsel %vm570, %v559, %v571
    %573 = vst [vmem:[#allocation2 + $0x8] sm:$0x8] %v572
    %574 = vrot.lane.b32.xlu0 %v431, 32
    %v575 = vpop.permute.xlu0 %574
    %576 = vrot.lane.b32.xlu0 %v435, 64
    %v577 = vpop.permute.xlu0 %576
    %v579 = vunpack.c.l.b16 %v212
    %v580 = vpack.c.b16 %v579, %v579
    %v582 = vshrl.u32 %v580, 16
    %584 = vrot.lane.b32.xlu0 %v582, 32
    %v585 = vpop.permute.xlu0 %584
    %v587 = vunpack.c.l.b16 %v213
    %v588 = vpack.c.b16 %v587, %v587
    %589 = vrot.lane.b32.xlu0 %v588, 96
    %v590 = vpop.permute.xlu0 %589
    %v592 = vshrl.u32 %v588, 16
    %v595 = vsel %vm242, 0, %v575
    %v597 = vsel %vm246, %v595, %v577
    %v598 = vsel %vm240, %v597, 0
    %v601 = vsel %vm242, %v212, %v585
    %v602 = vsel %vm246, %v601, 0
    %v604 = vsel %vm240, %v602, %v590
    %v607 = vunpack.c.l.b16 %v598
    %v608 = vunpack.c.l.b16 %v604
    %v609 = vunpack.c.l.b16 %v592
    %v610 = vpack.c.b16 %v608, %v607
    %v611 = vpack.c.b16 %v609, %v609
    %v614 = vld [vmem:[#allocation2 + $0xc] sm:$0x11]
    %v615 = vsel %vm265, %v610, %v614
    %616 = vst [vmem:[#allocation2 + $0xc] sm:$0x11] %v615
    %v617 = vld [vmem:[#allocation2 + $0x14] sm:$0x1]
    %v618 = vsel %vm270, %v611, %v617
    %619 = vst [vmem:[#allocation2 + $0x14] sm:$0x1] %v618
    %620 = vrot.lane.b32.xlu0 %v492, 32
    %v621 = vpop.permute.xlu0 %620
    %622 = vrot.lane.b32.xlu0 %v495, 64
    %v623 = vpop.permute.xlu0 %622
    %624 = vrot.lane.b32.xlu0 %v580, 96
    %v625 = vpop.permute.xlu0 %624
    %v626 = vshll.u32 %v580, 16
    %v628 = vrot.slane %v626, 1
    %v629 = vrot.slane %v580, 1
    %630 = vrot.lane.b32.xlu0 %v629, 32
    %v631 = vpop.permute.xlu0 %630
    %632 = vrot.lane.b32.xlu0 %v588, 64
    %v633 = vpop.permute.xlu0 %632
    %v634 = vshll.u32 %v588, 16
    %v636 = vrot.slane %v634, 1
    %637 = vrot.lane.b32.xlu0 %v636, 96
    %v638 = vpop.permute.xlu0 %637
    %v639 = vrot.slane %v588, 1
    %v642 = vsel %vm242, %v211, %v621
    %v644 = vsel %vm246, %v642, %v623
    %v646 = vsel %vm240, %v644, %v625
    %v649 = vsel %vm242, %v628, %v631
    %v651 = vsel %vm246, %v649, %v633
    %v653 = vsel %vm240, %v651, %v638
    %v656 = vunpack.c.l.b16 %v646
    %v657 = vunpack.c.l.b16 %v653
    %v658 = vunpack.c.l.b16 %v639
    %v659 = vpack.c.b16 %v657, %v656
    %v660 = vpack.c.b16 %v658, %v658
    %v663 = vld [vmem:[#allocation2 + $0xc] sm:$0x11]
    %v664 = vsel %vm314, %v659, %v663
    %665 = vst [vmem:[#allocation2 + $0xc] sm:$0x11] %v664
    %v666 = vld [vmem:[#allocation2 + $0x14] sm:$0x1]
    %v667 = vsel %vm318, %v660, %v666
    %668 = vst [vmem:[#allocation2 + $0x14] sm:$0x1] %v667
    %v670 = vshrl.u32 %v659, 16
    %v672 = vrot.slane %v670, 4
    %v673 = vrot.slane %v672, 4
    %v675 = vshrl.u32 %v660, 16
    %v677 = vrot.slane %v675, 4
    %v678 = vrot.slane %v677, 4
    %v681 = vld [vmem:[#allocation2 + $0xc] sm:$0x22]
    %v682 = vsel %vm360, %v673, %v681
    %683 = vst [vmem:[#allocation2 + $0xc] sm:$0x22] %v682
    %v684 = vld [vmem:[#allocation2 + $0x14] sm:$0x2]
    %v685 = vsel %vm365, %v678, %v684
    %686 = vst [vmem:[#allocation2 + $0x14] sm:$0x2] %v685
    %v687 = vrot.slane %v659, 5
    %v688 = vrot.slane %v687, 4
    %v689 = vrot.slane %v660, 5
    %v690 = vrot.slane %v689, 4
    %v693 = vld [vmem:[#allocation2 + $0xc] sm:$0x22]
    %v694 = vsel %vm411, %v688, %v693
    %695 = vst [vmem:[#allocation2 + $0xc] sm:$0x22] %v694
    %v696 = vld [vmem:[#allocation2 + $0x14] sm:$0x2]
    %v697 = vsel %vm415, %v690, %v696
    %698 = vst [vmem:[#allocation2 + $0x14] sm:$0x2] %v697
    %699 = vrot.lane.b32.xlu0 %v588, 32
    %v700 = vpop.permute.xlu0 %699
    %701 = vrot.lane.b32.xlu0 %v592, 64
    %v702 = vpop.permute.xlu0 %701
    %v704 = vunpack.c.l.b16 %v214
    %v705 = vpack.c.b16 %v704, %v704
    %v707 = vshrl.u32 %v705, 16
    %709 = vrot.lane.b32.xlu0 %v707, 32
    %v710 = vpop.permute.xlu0 %709
    %v712 = vunpack.c.l.b16 %v215
    %v713 = vpack.c.b16 %v712, %v712
    %714 = vrot.lane.b32.xlu0 %v713, 96
    %v715 = vpop.permute.xlu0 %714
    %v717 = vshrl.u32 %v713, 16
    %v720 = vsel %vm242, 0, %v700
    %v722 = vsel %vm246, %v720, %v702
    %v723 = vsel %vm240, %v722, 0
    %v726 = vsel %vm242, %v214, %v710
    %v727 = vsel %vm246, %v726, 0
    %v729 = vsel %vm240, %v727, %v715
    %v732 = vunpack.c.l.b16 %v723
    %v733 = vunpack.c.l.b16 %v729
    %v734 = vunpack.c.l.b16 %v717
    %v735 = vpack.c.b16 %v733, %v732
    %v736 = vpack.c.b16 %v734, %v734
    %v737 = vrot.slane %v735, 6
    %v738 = vrot.slane %v736, 6
    %v741 = vld [vmem:[#allocation2 + $0xc] sm:$0x44]
    %v742 = vsel %vm464, %v737, %v741
    %743 = vst [vmem:[#allocation2 + $0xc] sm:$0x44] %v742
    %v744 = vld [vmem:[#allocation2 + $0x14] sm:$0x4]
    %v745 = vsel %vm469, %v738, %v744
    %746 = vst [vmem:[#allocation2 + $0x14] sm:$0x4] %v745
    %747 = vrot.lane.b32.xlu0 %v636, 32
    %v748 = vpop.permute.xlu0 %747
    %749 = vrot.lane.b32.xlu0 %v639, 64
    %v750 = vpop.permute.xlu0 %749
    %751 = vrot.lane.b32.xlu0 %v705, 96
    %v752 = vpop.permute.xlu0 %751
    %v753 = vshll.u32 %v705, 16
    %v755 = vrot.slane %v753, 1
    %v756 = vrot.slane %v705, 1
    %757 = vrot.lane.b32.xlu0 %v756, 32
    %v758 = vpop.permute.xlu0 %757
    %759 = vrot.lane.b32.xlu0 %v713, 64
    %v760 = vpop.permute.xlu0 %759
    %v761 = vshll.u32 %v713, 16
    %v763 = vrot.slane %v761, 1
    %764 = vrot.lane.b32.xlu0 %v763, 96
    %v765 = vpop.permute.xlu0 %764
    %v766 = vrot.slane %v713, 1
    %v769 = vsel %vm242, %v213, %v748
    %v771 = vsel %vm246, %v769, %v750
    %v773 = vsel %vm240, %v771, %v752
    %v776 = vsel %vm242, %v755, %v758
    %v778 = vsel %vm246, %v776, %v760
    %v780 = vsel %vm240, %v778, %v765
    %v783 = vunpack.c.l.b16 %v773
    %v784 = vunpack.c.l.b16 %v780
    %v785 = vunpack.c.l.b16 %v766
    %v786 = vpack.c.b16 %v784, %v783
    %v787 = vpack.c.b16 %v785, %v785
    %v788 = vrot.slane %v786, 6
    %v789 = vrot.slane %v787, 6
    %v792 = vld [vmem:[#allocation2 + $0xc] sm:$0x44]
    %v793 = vsel %vm525, %v788, %v792
    %794 = vst [vmem:[#allocation2 + $0xc] sm:$0x44] %v793
    %v795 = vld [vmem:[#allocation2 + $0x14] sm:$0x4]
    %v796 = vsel %vm529, %v789, %v795
    %797 = vst [vmem:[#allocation2 + $0x14] sm:$0x4] %v796
    %v799 = vshrl.u32 %v786, 16
    %v801 = vrot.slane %v799, 6
    %v803 = vshrl.u32 %v787, 16
    %v805 = vrot.slane %v803, 6
    %v808 = vld [vmem:[#allocation2 + $0xc] sm:$0x88]
    %v809 = vsel %vm549, %v801, %v808
    %810 = vst [vmem:[#allocation2 + $0xc] sm:$0x88] %v809
    %v811 = vld [vmem:[#allocation2 + $0x14] sm:$0x8]
    %v812 = vsel %vm554, %v805, %v811
    %813 = vst [vmem:[#allocation2 + $0x14] sm:$0x8] %v812
    %v814 = vrot.slane %v786, 7
    %v815 = vrot.slane %v787, 7
    %v818 = vld [vmem:[#allocation2 + $0xc] sm:$0x88]
    %v819 = vsel %vm566, %v814, %v818
    %820 = vst [vmem:[#allocation2 + $0xc] sm:$0x88] %v819
    %v821 = vld [vmem:[#allocation2 + $0x14] sm:$0x8]
    %v822 = vsel %vm570, %v815, %v821
    %823 = vst [vmem:[#allocation2 + $0x14] sm:$0x8] %v822
    %v825 = vunpack.c.l.b16 %v216
    %v826 = vpack.c.b16 %v825, %v825
    %v828 = vshrl.u32 %v826, 16
    %830 = vrot.lane.b32.xlu0 %v828, 32
    %v831 = vpop.permute.xlu0 %830
    %v833 = vunpack.c.l.b16 %v217
    %v834 = vpack.c.b16 %v833, %v833
    %835 = vrot.lane.b32.xlu0 %v834, 96
    %v836 = vpop.permute.xlu0 %835
    %v838 = vshrl.u32 %v834, 16
    %v842 = vsel %vm242, %v216, %v831
    %v843 = vsel %vm246, %v842, 0
    %v845 = vsel %vm240, %v843, %v836
    %v847 = vunpack.c.l.b16 %v845
    %v848 = vunpack.c.l.b16 %v838
    %v849 = vpack.c.b16 %v847, %v252
    %v850 = vpack.c.b16 %v848, %v848
    %v853 = vld [vmem:[#allocation2 + $0x18] sm:$0x11]
    %v854 = vsel %vm265, %v849, %v853
    %855 = vst [vmem:[#allocation2 + $0x18] sm:$0x11] %v854
    %v856 = vld [vmem:[#allocation2 + $0x20] sm:$0x1]
    %v857 = vsel %vm270, %v850, %v856
    %858 = vst [vmem:[#allocation2 + $0x20] sm:$0x1] %v857
    %859 = vrot.lane.b32.xlu0 %v828, 96
    %v860 = vpop.permute.xlu0 %859
    %v861 = vrot.slane %v826, 1
    %v862 = vrot.slane %v828, 1
    %863 = vrot.lane.b32.xlu0 %v862, 32
    %v864 = vpop.permute.xlu0 %863
    %865 = vrot.lane.b32.xlu0 %v838, 64
    %v866 = vpop.permute.xlu0 %865
    %v867 = vrot.slane %v834, 1
    %868 = vrot.lane.b32.xlu0 %v867, 96
    %v869 = vpop.permute.xlu0 %868
    %v870 = vrot.slane %v838, 1
    %v872 = vsel %vm240, 0, %v860
    %v875 = vsel %vm242, %v861, %v864
    %v877 = vsel %vm246, %v875, %v866
    %v879 = vsel %vm240, %v877, %v869
    %v882 = vunpack.c.l.b16 %v872
    %v883 = vunpack.c.l.b16 %v879
    %v884 = vunpack.c.l.b16 %v870
    %v885 = vpack.c.b16 %v883, %v882
    %v886 = vpack.c.b16 %v884, %v884
    %v888 = vshll.u32 %v885, 16
    %v891 = vshll.u32 %v886, 16
    %v895 = vld [vmem:[#allocation2 + $0x18] sm:$0x11]
    %v896 = vsel %vm314, %v888, %v895
    %897 = vst [vmem:[#allocation2 + $0x18] sm:$0x11] %v896
    %v898 = vld [vmem:[#allocation2 + $0x20] sm:$0x1]
    %v899 = vsel %vm318, %v891, %v898
    %900 = vst [vmem:[#allocation2 + $0x20] sm:$0x1] %v899
    %901 = vrot.lane.b32.xlu0 %v862, 96
    %v902 = vpop.permute.xlu0 %901
    %v903 = vrot.slane %v826, 2
    %v904 = vrot.slane %v828, 2
    %905 = vrot.lane.b32.xlu0 %v904, 32
    %v906 = vpop.permute.xlu0 %905
    %907 = vrot.lane.b32.xlu0 %v870, 64
    %v908 = vpop.permute.xlu0 %907
    %v909 = vrot.slane %v834, 2
    %910 = vrot.lane.b32.xlu0 %v909, 96
    %v911 = vpop.permute.xlu0 %910
    %v912 = vrot.slane %v838, 2
    %v914 = vsel %vm240, 0, %v902
    %v917 = vsel %vm242, %v903, %v906
    %v919 = vsel %vm246, %v917, %v908
    %v921 = vsel %vm240, %v919, %v911
    %v924 = vunpack.c.l.b16 %v914
    %v925 = vunpack.c.l.b16 %v921
    %v926 = vunpack.c.l.b16 %v912
    %v927 = vpack.c.b16 %v925, %v924
    %v928 = vpack.c.b16 %v926, %v926
    %v929 = vrot.slane %v927, 7
    %v930 = vrot.slane %v928, 7
    %v933 = vld [vmem:[#allocation2 + $0x18] sm:$0x22]
    %v934 = vsel %vm360, %v929, %v933
    %935 = vst [vmem:[#allocation2 + $0x18] sm:$0x22] %v934
    %v936 = vld [vmem:[#allocation2 + $0x20] sm:$0x2]
    %v937 = vsel %vm365, %v930, %v936
    %938 = vst [vmem:[#allocation2 + $0x20] sm:$0x2] %v937
    %939 = vrot.lane.b32.xlu0 %v904, 96
    %v940 = vpop.permute.xlu0 %939
    %v941 = vrot.slane %v826, 3
    %v942 = vrot.slane %v828, 3
    %943 = vrot.lane.b32.xlu0 %v942, 32
    %v944 = vpop.permute.xlu0 %943
    %945 = vrot.lane.b32.xlu0 %v912, 64
    %v946 = vpop.permute.xlu0 %945
    %v947 = vrot.slane %v834, 3
    %948 = vrot.lane.b32.xlu0 %v947, 96
    %v949 = vpop.permute.xlu0 %948
    %v950 = vrot.slane %v838, 3
    %v952 = vsel %vm240, 0, %v940
    %v955 = vsel %vm242, %v941, %v944
    %v957 = vsel %vm246, %v955, %v946
    %v959 = vsel %vm240, %v957, %v949
    %v962 = vunpack.c.l.b16 %v952
    %v963 = vunpack.c.l.b16 %v959
    %v964 = vunpack.c.l.b16 %v950
    %v965 = vpack.c.b16 %v963, %v962
    %v966 = vpack.c.b16 %v964, %v964
    %v968 = vshll.u32 %v965, 16
    %v970 = vrot.slane %v968, 7
    %v972 = vshll.u32 %v966, 16
    %v974 = vrot.slane %v972, 7
    %v977 = vld [vmem:[#allocation2 + $0x18] sm:$0x22]
    %v978 = vsel %vm411, %v970, %v977
    %979 = vst [vmem:[#allocation2 + $0x18] sm:$0x22] %v978
    %v980 = vld [vmem:[#allocation2 + $0x20] sm:$0x2]
    %v981 = vsel %vm415, %v974, %v980
    %982 = vst [vmem:[#allocation2 + $0x20] sm:$0x2] %v981
    %983 = vrot.lane.b32.xlu0 %v834, 32
    %v984 = vpop.permute.xlu0 %983
    %v986 = vunpack.c.l.b16 %v218
    %v987 = vpack.c.b16 %v986, %v986
    %v989 = vshrl.u32 %v987, 16
    %991 = vrot.lane.b32.xlu0 %v989, 32
    %v992 = vpop.permute.xlu0 %991
    %v994 = vunpack.c.l.b16 %v219
    %v995 = vpack.c.b16 %v994, %v994
    %996 = vrot.lane.b32.xlu0 %v995, 96
    %v997 = vpop.permute.xlu0 %996
    %v999 = vshrl.u32 %v995, 16
    %v1002 = vsel %vm242, 0, %v984
    %v1003 = vsel %vm246, %v1002, %v866
    %v1004 = vsel %vm240, %v1003, 0
    %v1007 = vsel %vm242, %v218, %v992
    %v1008 = vsel %vm246, %v1007, 0
    %v1010 = vsel %vm240, %v1008, %v997
    %v1013 = vunpack.c.l.b16 %v1004
    %v1014 = vunpack.c.l.b16 %v1010
    %v1015 = vunpack.c.l.b16 %v999
    %v1016 = vpack.c.b16 %v1014, %v1013
    %v1017 = vpack.c.b16 %v1015, %v1015
    %v1018 = vrot.slane %v1016, 6
    %v1019 = vrot.slane %v1017, 6
    %v1022 = vld [vmem:[#allocation2 + $0x18] sm:$0x44]
    %v1023 = vsel %vm464, %v1018, %v1022
    %1024 = vst [vmem:[#allocation2 + $0x18] sm:$0x44] %v1023
    %v1025 = vld [vmem:[#allocation2 + $0x20] sm:$0x4]
    %v1026 = vsel %vm469, %v1019, %v1025
    %1027 = vst [vmem:[#allocation2 + $0x20] sm:$0x4] %v1026
    %v1028 = vshll.u32 %v834, 16
    %v1030 = vrot.slane %v1028, 1
    %1031 = vrot.lane.b32.xlu0 %v1030, 32
    %v1032 = vpop.permute.xlu0 %1031
    %1033 = vrot.lane.b32.xlu0 %v867, 64
    %v1034 = vpop.permute.xlu0 %1033
    %1035 = vrot.lane.b32.xlu0 %v987, 96
    %v1036 = vpop.permute.xlu0 %1035
    %v1037 = vshll.u32 %v987, 16
    %v1039 = vrot.slane %v1037, 1
    %v1040 = vrot.slane %v987, 1
    %1041 = vrot.lane.b32.xlu0 %v1040, 32
    %v1042 = vpop.permute.xlu0 %1041
    %1043 = vrot.lane.b32.xlu0 %v995, 64
    %v1044 = vpop.permute.xlu0 %1043
    %v1045 = vshll.u32 %v995, 16
    %v1047 = vrot.slane %v1045, 1
    %1048 = vrot.lane.b32.xlu0 %v1047, 96
    %v1049 = vpop.permute.xlu0 %1048
    %v1050 = vrot.slane %v995, 1
    %v1053 = vsel %vm242, %v217, %v1032
    %v1055 = vsel %vm246, %v1053, %v1034
    %v1057 = vsel %vm240, %v1055, %v1036
    %v1060 = vsel %vm242, %v1039, %v1042
    %v1062 = vsel %vm246, %v1060, %v1044
    %v1064 = vsel %vm240, %v1062, %v1049
    %v1067 = vunpack.c.l.b16 %v1057
    %v1068 = vunpack.c.l.b16 %v1064
    %v1069 = vunpack.c.l.b16 %v1050
    %v1070 = vpack.c.b16 %v1068, %v1067
    %v1071 = vpack.c.b16 %v1069, %v1069
    %v1072 = vrot.slane %v1070, 6
    %v1073 = vrot.slane %v1071, 6
    %v1076 = vld [vmem:[#allocation2 + $0x18] sm:$0x44]
    %v1077 = vsel %vm525, %v1072, %v1076
    %1078 = vst [vmem:[#allocation2 + $0x18] sm:$0x44] %v1077
    %v1079 = vld [vmem:[#allocation2 + $0x20] sm:$0x4]
    %v1080 = vsel %vm529, %v1073, %v1079
    %1081 = vst [vmem:[#allocation2 + $0x20] sm:$0x4] %v1080
    %v1083 = vshrl.u32 %v1070, 16
    %v1085 = vrot.slane %v1083, 6
    %v1087 = vshrl.u32 %v1071, 16
    %v1089 = vrot.slane %v1087, 6
    %v1092 = vld [vmem:[#allocation2 + $0x18] sm:$0x88]
    %v1093 = vsel %vm549, %v1085, %v1092
    %1094 = vst [vmem:[#allocation2 + $0x18] sm:$0x88] %v1093
    %v1095 = vld [vmem:[#allocation2 + $0x20] sm:$0x8]
    %v1096 = vsel %vm554, %v1089, %v1095
    %1097 = vst [vmem:[#allocation2 + $0x20] sm:$0x8] %v1096
    %v1098 = vrot.slane %v1070, 7
    %v1099 = vrot.slane %v1071, 7
    %v1102 = vld [vmem:[#allocation2 + $0x18] sm:$0x88]
    %v1103 = vsel %vm566, %v1098, %v1102
    %1104 = vst [vmem:[#allocation2 + $0x18] sm:$0x88] %v1103
    %v1105 = vld [vmem:[#allocation2 + $0x20] sm:$0x8]
    %v1106 = vsel %vm570, %v1099, %v1105
    %1107 = vst [vmem:[#allocation2 + $0x20] sm:$0x8] %v1106
    %1108 = vrot.lane.b32.xlu0 %v995, 32
    %v1109 = vpop.permute.xlu0 %1108
    %1110 = vrot.lane.b32.xlu0 %v999, 64
    %v1111 = vpop.permute.xlu0 %1110
    %v1113 = vunpack.c.l.b16 %v220
    %v1114 = vpack.c.b16 %v1113, %v1113
    %v1116 = vshrl.u32 %v1114, 16
    %1118 = vrot.lane.b32.xlu0 %v1116, 32
    %v1119 = vpop.permute.xlu0 %1118
    %v1121 = vunpack.c.l.b16 %v221
    %v1122 = vpack.c.b16 %v1121, %v1121
    %1123 = vrot.lane.b32.xlu0 %v1122, 96
    %v1124 = vpop.permute.xlu0 %1123
    %v1126 = vshrl.u32 %v1122, 16
    %v1129 = vsel %vm242, 0, %v1109
    %v1131 = vsel %vm246, %v1129, %v1111
    %v1132 = vsel %vm240, %v1131, 0
    %v1135 = vsel %vm242, %v220, %v1119
    %v1136 = vsel %vm246, %v1135, 0
    %v1138 = vsel %vm240, %v1136, %v1124
    %v1141 = vunpack.c.l.b16 %v1132
    %v1142 = vunpack.c.l.b16 %v1138
    %v1143 = vunpack.c.l.b16 %v1126
    %v1144 = vpack.c.b16 %v1142, %v1141
    %v1145 = vpack.c.b16 %v1143, %v1143
    %v1148 = vld [vmem:[#allocation2 + $0x24] sm:$0x11]
    %v1149 = vsel %vm265, %v1144, %v1148
    %1150 = vst [vmem:[#allocation2 + $0x24] sm:$0x11] %v1149
    %v1151 = vld [vmem:[#allocation2 + $0x2c] sm:$0x1]
    %v1152 = vsel %vm270, %v1145, %v1151
    %1153 = vst [vmem:[#allocation2 + $0x2c] sm:$0x1] %v1152
    %1154 = vrot.lane.b32.xlu0 %v1047, 32
    %v1155 = vpop.permute.xlu0 %1154
    %1156 = vrot.lane.b32.xlu0 %v1050, 64
    %v1157 = vpop.permute.xlu0 %1156
    %1158 = vrot.lane.b32.xlu0 %v1114, 96
    %v1159 = vpop.permute.xlu0 %1158
    %v1160 = vshll.u32 %v1114, 16
    %v1162 = vrot.slane %v1160, 1
    %v1163 = vrot.slane %v1114, 1
    %1164 = vrot.lane.b32.xlu0 %v1163, 32
    %v1165 = vpop.permute.xlu0 %1164
    %1166 = vrot.lane.b32.xlu0 %v1122, 64
    %v1167 = vpop.permute.xlu0 %1166
    %v1168 = vshll.u32 %v1122, 16
    %v1170 = vrot.slane %v1168, 1
    %1171 = vrot.lane.b32.xlu0 %v1170, 96
    %v1172 = vpop.permute.xlu0 %1171
    %v1173 = vrot.slane %v1122, 1
    %v1176 = vsel %vm242, %v219, %v1155
    %v1178 = vsel %vm246, %v1176, %v1157
    %v1180 = vsel %vm240, %v1178, %v1159
    %v1183 = vsel %vm242, %v1162, %v1165
    %v1185 = vsel %vm246, %v1183, %v1167
    %v1187 = vsel %vm240, %v1185, %v1172
    %v1190 = vunpack.c.l.b16 %v1180
    %v1191 = vunpack.c.l.b16 %v1187
    %v1192 = vunpack.c.l.b16 %v1173
    %v1193 = vpack.c.b16 %v1191, %v1190
    %v1194 = vpack.c.b16 %v1192, %v1192
    %v1197 = vld [vmem:[#allocation2 + $0x24] sm:$0x11]
    %v1198 = vsel %vm314, %v1193, %v1197
    %1199 = vst [vmem:[#allocation2 + $0x24] sm:$0x11] %v1198
    %v1200 = vld [vmem:[#allocation2 + $0x2c] sm:$0x1]
    %v1201 = vsel %vm318, %v1194, %v1200
    %1202 = vst [vmem:[#allocation2 + $0x2c] sm:$0x1] %v1201
    %v1204 = vshrl.u32 %v1193, 16
    %v1206 = vrot.slane %v1204, 4
    %v1207 = vrot.slane %v1206, 4
    %v1209 = vshrl.u32 %v1194, 16
    %v1211 = vrot.slane %v1209, 4
    %v1212 = vrot.slane %v1211, 4
    %v1215 = vld [vmem:[#allocation2 + $0x24] sm:$0x22]
    %v1216 = vsel %vm360, %v1207, %v1215
    %1217 = vst [vmem:[#allocation2 + $0x24] sm:$0x22] %v1216
    %v1218 = vld [vmem:[#allocation2 + $0x2c] sm:$0x2]
    %v1219 = vsel %vm365, %v1212, %v1218
    %1220 = vst [vmem:[#allocation2 + $0x2c] sm:$0x2] %v1219
    %v1221 = vrot.slane %v1193, 5
    %v1222 = vrot.slane %v1221, 4
    %v1223 = vrot.slane %v1194, 5
    %v1224 = vrot.slane %v1223, 4
    %v1227 = vld [vmem:[#allocation2 + $0x24] sm:$0x22]
    %v1228 = vsel %vm411, %v1222, %v1227
    %1229 = vst [vmem:[#allocation2 + $0x24] sm:$0x22] %v1228
    %v1230 = vld [vmem:[#allocation2 + $0x2c] sm:$0x2]
    %v1231 = vsel %vm415, %v1224, %v1230
    %1232 = vst [vmem:[#allocation2 + $0x2c] sm:$0x2] %v1231
    %1233 = vrot.lane.b32.xlu0 %v1122, 32
    %v1234 = vpop.permute.xlu0 %1233
    %1235 = vrot.lane.b32.xlu0 %v1126, 64
    %v1236 = vpop.permute.xlu0 %1235
    %v1238 = vunpack.c.l.b16 %v222
    %v1239 = vpack.c.b16 %v1238, %v1238
    %v1241 = vshrl.u32 %v1239, 16
    %1243 = vrot.lane.b32.xlu0 %v1241, 32
    %v1244 = vpop.permute.xlu0 %1243
    %v1246 = vunpack.c.l.b16 %v223
    %v1247 = vpack.c.b16 %v1246, %v1246
    %1248 = vrot.lane.b32.xlu0 %v1247, 96
    %v1249 = vpop.permute.xlu0 %1248
    %v1251 = vshrl.u32 %v1247, 16
    %v1254 = vsel %vm242, 0, %v1234
    %v1256 = vsel %vm246, %v1254, %v1236
    %v1257 = vsel %vm240, %v1256, 0
    %v1260 = vsel %vm242, %v222, %v1244
    %v1261 = vsel %vm246, %v1260, 0
    %v1263 = vsel %vm240, %v1261, %v1249
    %v1266 = vunpack.c.l.b16 %v1257
    %v1267 = vunpack.c.l.b16 %v1263
    %v1268 = vunpack.c.l.b16 %v1251
    %v1269 = vpack.c.b16 %v1267, %v1266
    %v1270 = vpack.c.b16 %v1268, %v1268
    %v1271 = vrot.slane %v1269, 6
    %v1272 = vrot.slane %v1270, 6
    %v1275 = vld [vmem:[#allocation2 + $0x24] sm:$0x44]
    %v1276 = vsel %vm464, %v1271, %v1275
    %1277 = vst [vmem:[#allocation2 + $0x24] sm:$0x44] %v1276
    %v1278 = vld [vmem:[#allocation2 + $0x2c] sm:$0x4]
    %v1279 = vsel %vm469, %v1272, %v1278
    %1280 = vst [vmem:[#allocation2 + $0x2c] sm:$0x4] %v1279
    %1281 = vrot.lane.b32.xlu0 %v1170, 32
    %v1282 = vpop.permute.xlu0 %1281
    %1283 = vrot.lane.b32.xlu0 %v1173, 64
    %v1284 = vpop.permute.xlu0 %1283
    %1285 = vrot.lane.b32.xlu0 %v1239, 96
    %v1286 = vpop.permute.xlu0 %1285
    %v1287 = vshll.u32 %v1239, 16
    %v1289 = vrot.slane %v1287, 1
    %v1290 = vrot.slane %v1239, 1
    %1291 = vrot.lane.b32.xlu0 %v1290, 32
    %v1292 = vpop.permute.xlu0 %1291
    %1293 = vrot.lane.b32.xlu0 %v1247, 64
    %v1294 = vpop.permute.xlu0 %1293
    %v1295 = vshll.u32 %v1247, 16
    %v1297 = vrot.slane %v1295, 1
    %1298 = vrot.lane.b32.xlu0 %v1297, 96
    %v1299 = vpop.permute.xlu0 %1298
    %v1300 = vrot.slane %v1247, 1
    %v1303 = vsel %vm242, %v221, %v1282
    %v1305 = vsel %vm246, %v1303, %v1284
    %v1307 = vsel %vm240, %v1305, %v1286
    %v1310 = vsel %vm242, %v1289, %v1292
    %v1312 = vsel %vm246, %v1310, %v1294
    %v1314 = vsel %vm240, %v1312, %v1299
    %v1317 = vunpack.c.l.b16 %v1307
    %v1318 = vunpack.c.l.b16 %v1314
    %v1319 = vunpack.c.l.b16 %v1300
    %v1320 = vpack.c.b16 %v1318, %v1317
    %v1321 = vpack.c.b16 %v1319, %v1319
    %v1322 = vrot.slane %v1320, 6
    %v1323 = vrot.slane %v1321, 6
    %v1326 = vld [vmem:[#allocation2 + $0x24] sm:$0x44]
    %v1327 = vsel %vm525, %v1322, %v1326
    %1328 = vst [vmem:[#allocation2 + $0x24] sm:$0x44] %v1327
    %v1329 = vld [vmem:[#allocation2 + $0x2c] sm:$0x4]
    %v1330 = vsel %vm529, %v1323, %v1329
    %1331 = vst [vmem:[#allocation2 + $0x2c] sm:$0x4] %v1330
    %v1333 = vshrl.u32 %v1320, 16
    %v1335 = vrot.slane %v1333, 6
    %v1337 = vshrl.u32 %v1321, 16
    %v1339 = vrot.slane %v1337, 6
    %v1342 = vld [vmem:[#allocation2 + $0x24] sm:$0x88]
    %v1343 = vsel %vm549, %v1335, %v1342
    %1344 = vst [vmem:[#allocation2 + $0x24] sm:$0x88] %v1343
    %v1345 = vld [vmem:[#allocation2 + $0x2c] sm:$0x8]
    %v1346 = vsel %vm554, %v1339, %v1345
    %1347 = vst [vmem:[#allocation2 + $0x2c] sm:$0x8] %v1346
    %v1348 = vrot.slane %v1320, 7
    %v1349 = vrot.slane %v1321, 7
    %v1352 = vld [vmem:[#allocation2 + $0x24] sm:$0x88]
    %v1353 = vsel %vm566, %v1348, %v1352
    %1354 = vst [vmem:[#allocation2 + $0x24] sm:$0x88] %v1353
    %v1355 = vld [vmem:[#allocation2 + $0x2c] sm:$0x8]
    %v1356 = vsel %vm570, %v1349, %v1355
    %1357 = vst [vmem:[#allocation2 + $0x2c] sm:$0x8] %v1356
    %v1358 = vld [vmem:[#allocation2] sm:$0xff]
    %v1359 = vld [vmem:[#allocation2 + $0x8] sm:$0xf]
    %v1360 = vld [vmem:[#allocation2 + $0xc] sm:$0xff]
    %v1361 = vld [vmem:[#allocation2 + $0x14] sm:$0xf]
    %v1362 = vld [vmem:[#allocation2 + $0x18] sm:$0xff]
    %v1363 = vld [vmem:[#allocation2 + $0x20] sm:$0xf]
    %v1364 = vld [vmem:[#allocation2 + $0x24] sm:$0xff]
    %v1365 = vld [vmem:[#allocation2 + $0x2c] sm:$0xf]
    %v1366 = vld [vmem:[%s3] sm:$0xf]
    %v1367 = vld [vmem:[%s3 + $0x4] sm:$0xf]
    %v1368 = vld [vmem:[%s3 + $0x8] sm:$0xf]
    %v1369 = vld [vmem:[%s3 + $0xc] sm:$0xf]
    %v1370 = vld [vmem:[%s3 + $0x10] sm:$0xf]
    %v1371 = vld [vmem:[%s3 + $0x14] sm:$0xf]
    %v1372 = vld [vmem:[%s3 + $0x18] sm:$0xf]
    %v1373 = vld [vmem:[%s3 + $0x1c] sm:$0xf]
    %v1374 = vld [vmem:[%s3 + $0x20] sm:$0xf]
    %v1375 = vld [vmem:[%s3 + $0x24] sm:$0xf]
    %v1376 = vld [vmem:[%s3 + $0x28] sm:$0xf]
    %v1377 = vld [vmem:[%s3 + $0x2c] sm:$0xf]
    %v1378 = vld [vmem:[%s3 + $0x30] sm:$0xf]
    %v1379 = vld [vmem:[%s3 + $0x34] sm:$0xf]
    %v1380 = vld [vmem:[%s3 + $0x38] sm:$0xf]
    %v1381 = vld [vmem:[%s3 + $0x3c] sm:$0xf]
    %v1382 = vld [vmem:[%s3 + $0x40] sm:$0xf]
    %v1383 = vld [vmem:[%s3 + $0x44] sm:$0xf]
    %v1384 = vld [vmem:[%s3 + $0x48] sm:$0xf]
    %v1385 = vld [vmem:[%s3 + $0x4c] sm:$0xf]
    %v1386 = vld [vmem:[%s3 + $0x50] sm:$0xf]
    %v1387 = vld [vmem:[%s3 + $0x54] sm:$0xf]
    %v1388 = vld [vmem:[%s3 + $0x58] sm:$0xf]
    %v1389 = vld [vmem:[%s3 + $0x5c] sm:$0xf]
    %v1390 = vld [vmem:[%s3 + $0x60] sm:$0xf]
    %v1391 = vld [vmem:[%s3 + $0x64] sm:$0xf]
    %v1392 = vld [vmem:[%s3 + $0x68] sm:$0xf]
    %v1393 = vld [vmem:[%s3 + $0x6c] sm:$0xf]
    %v1394 = vld [vmem:[%s3 + $0x70] sm:$0xf]
    %v1395 = vld [vmem:[%s3 + $0x74] sm:$0xf]
    %v1396 = vld [vmem:[%s3 + $0x78] sm:$0xf]
    %v1397 = vld [vmem:[%s3 + $0x7c] sm:$0xf]
    %v1398 = vld [vmem:[%s3 + $0x80] sm:$0xf]
    %v1399 = vld [vmem:[%s3 + $0x84] sm:$0xf]
    %v1400 = vld [vmem:[%s3 + $0x88] sm:$0xf]
    %v1401 = vld [vmem:[%s3 + $0x8c] sm:$0xf]
    %v1402 = vld [vmem:[%s4] sm:$0x1]
    %v1404 = vperm.slane %v1402, 0
    %v1414 = vunpack.c.l.b16 %v1358
    %v1415 = vunpack.c.h.b16 %v1358
    %v1416 = vunpack.c.l.b16 %v1359
    %v1417 = vunpack.c.l.b16 %v1360
    %v1418 = vunpack.c.h.b16 %v1360
    %v1419 = vunpack.c.l.b16 %v1361
    %v1420 = vunpack.c.l.b16 %v1362
    %v1421 = vunpack.c.h.b16 %v1362
    %v1422 = vunpack.c.l.b16 %v1363
    %v1423 = vunpack.c.l.b16 %v1364
    %v1424 = vunpack.c.h.b16 %v1364
    %v1425 = vunpack.c.l.b16 %v1365
    %v1426 = vpack.c.b16 %v1417, %v1414
    %v1427 = vpack.c.b16 %v1418, %v1415
    %v1428 = vpack.c.b16 %v1419, %v1416
    %v1429 = vpack.c.b16 %v1423, %v1420
    %v1430 = vpack.c.b16 %v1424, %v1421
    %v1431 = vpack.c.b16 %v1425, %v1422
    %v1472 = vunpack.c.l.b16 %v1366
    %v1473 = vunpack.c.l.b16 %v1367
    %v1474 = vunpack.c.l.b16 %v1368
    %v1475 = vunpack.c.l.b16 %v1369
    %v1476 = vunpack.c.l.b16 %v1370
    %v1477 = vunpack.c.l.b16 %v1371
    %v1478 = vunpack.c.l.b16 %v1372
    %v1479 = vunpack.c.l.b16 %v1373
    %v1480 = vunpack.c.l.b16 %v1374
    %v1481 = vunpack.c.l.b16 %v1375
    %v1482 = vunpack.c.l.b16 %v1376
    %v1483 = vunpack.c.l.b16 %v1377
    %v1484 = vunpack.c.l.b16 %v1378
    %v1485 = vunpack.c.l.b16 %v1379
    %v1486 = vunpack.c.l.b16 %v1380
    %v1487 = vunpack.c.l.b16 %v1381
    %v1488 = vunpack.c.l.b16 %v1382
    %v1489 = vunpack.c.l.b16 %v1383
    %v1490 = vunpack.c.l.b16 %v1384
    %v1491 = vunpack.c.l.b16 %v1385
    %v1492 = vunpack.c.l.b16 %v1386
    %v1493 = vunpack.c.l.b16 %v1387
    %v1494 = vunpack.c.l.b16 %v1388
    %v1495 = vunpack.c.l.b16 %v1389
    %v1496 = vunpack.c.l.b16 %v1390
    %v1497 = vunpack.c.l.b16 %v1391
    %v1498 = vunpack.c.l.b16 %v1392
    %v1499 = vunpack.c.l.b16 %v1393
    %v1500 = vunpack.c.l.b16 %v1394
    %v1501 = vunpack.c.l.b16 %v1395
    %v1502 = vunpack.c.l.b16 %v1396
    %v1503 = vunpack.c.l.b16 %v1397
    %v1504 = vunpack.c.l.b16 %v1398
    %v1505 = vunpack.c.l.b16 %v1399
    %v1506 = vunpack.c.l.b16 %v1400
    %v1507 = vunpack.c.l.b16 %v1401
    %v1508 = vpack.c.b16 %v1473, %v1472
    %v1509 = vpack.c.b16 %v1475, %v1474
    %v1510 = vpack.c.b16 %v1477, %v1476
    %v1511 = vpack.c.b16 %v1479, %v1478
    %v1512 = vpack.c.b16 %v1481, %v1480
    %v1513 = vpack.c.b16 %v1483, %v1482
    %v1514 = vpack.c.b16 %v1485, %v1484
    %v1515 = vpack.c.b16 %v1487, %v1486
    %v1516 = vpack.c.b16 %v1489, %v1488
    %v1517 = vpack.c.b16 %v1491, %v1490
    %v1518 = vpack.c.b16 %v1493, %v1492
    %v1519 = vpack.c.b16 %v1495, %v1494
    %v1520 = vpack.c.b16 %v1497, %v1496
    %v1521 = vpack.c.b16 %v1499, %v1498
    %v1522 = vpack.c.b16 %v1501, %v1500
    %v1523 = vpack.c.b16 %v1503, %v1502
    %v1524 = vpack.c.b16 %v1505, %v1504
    %v1525 = vpack.c.b16 %v1507, %v1506
    %v1545 = vsel %vm242, %v1428, 0
    %v1548 = vsel %vm242, %v1431, 0
    %1550 = vmatpush.bf16.msra.mxu0 %v1515
    %1551 = vmatpush.bf16.msra.mxu0 %v1514
    %1552 = vmatpush.bf16.msra.mxu0 %v1513
    %1553 = vmatpush.bf16.msra.mxu0 %v1512
    %1554 = vmatpush.bf16.msra.mxu0 %v1511
    %1555 = vmatpush.bf16.msra.mxu0 %v1510
    %1556 = vmatpush.bf16.msra.mxu0 %v1509
    %1557 = vmatpush.bf16.msra.mxu0 %v1508
    %1558 = vmatmul.bf16.gmra.mxu0 %v1426
    %v1559 = vpop.f32.mrf.mxu0
    %v1560 = vadd.f32 %v1404, %v1559
    %v1561 = vpop.f32.mrf.mxu0
    %v1562 = vadd.f32 %v1404, %v1561
    %1563 = vmatmul.bf16.gmra.mxu0 %v1429
    %v1564 = vpop.f32.mrf.mxu0
    %v1565 = vadd.f32 %v1404, %v1564
    %v1566 = vpop.f32.mrf.mxu0
    %v1567 = vadd.f32 %v1404, %v1566
    %1568 = vdwg.mxu0
    %1569 = vmatpush.bf16.msra.mxu0 %v1523
    %1570 = vmatpush.bf16.msra.mxu0 %v1522
    %1571 = vmatpush.bf16.msra.mxu0 %v1521
    %1572 = vmatpush.bf16.msra.mxu0 %v1520
    %1573 = vmatpush.bf16.msra.mxu0 %v1519
    %1574 = vmatpush.bf16.msra.mxu0 %v1518
    %1575 = vmatpush.bf16.msra.mxu0 %v1517
    %1576 = vmatpush.bf16.msra.mxu0 %v1516
    %1577 = vmatmul.bf16.gmra.mxu0 %v1427
    %v1578 = vpop.f32.mrf.mxu0
    %v1579 = vadd.f32 %v1560, %v1578
    %v1580 = vpop.f32.mrf.mxu0
    %v1581 = vadd.f32 %v1562, %v1580
    %1582 = vmatmul.bf16.gmra.mxu0 %v1430
    %v1583 = vpop.f32.mrf.mxu0
    %v1584 = vadd.f32 %v1565, %v1583
    %v1585 = vpop.f32.mrf.mxu0
    %v1586 = vadd.f32 %v1567, %v1585
    %1587 = vdwg.mxu0
    %1588 = vmatpush.bf16.msra.mxu0 0
    %1589 = vmatpush.bf16.msra.mxu0 0
    %1590 = vmatpush.bf16.msra.mxu0 0
    %1591 = vmatpush.bf16.msra.mxu0 0
    %1592 = vmatpush.bf16.msra.mxu0 0
    %1593 = vmatpush.bf16.msra.mxu0 0
    %1594 = vmatpush.bf16.msra.mxu0 %v1525
    %1595 = vmatpush.bf16.msra.mxu0 %v1524
    %1596 = vmatmul.bf16.gmra.mxu0 %v1545
    %v1597 = vpop.f32.mrf.mxu0
    %v1598 = vadd.f32 %v1579, %v1597
    %v1599 = vpop.f32.mrf.mxu0
    %v1600 = vadd.f32 %v1581, %v1599
    %1601 = vmatmul.bf16.gmra.mxu0 %v1548
    %v1602 = vpop.f32.mrf.mxu0
    %v1603 = vadd.f32 %v1584, %v1602
    %v1604 = vpop.f32.mrf.mxu0
    %v1605 = vadd.f32 %v1586, %v1604
    %1606 = vdwg.mxu0
    %v1607 = vmax.f32 %v1598, 0.0
    %v1608 = vmax.f32 %v1600, 0.0
    %v1609 = vmax.f32 %v1603, 0.0
    %v1610 = vmax.f32 %v1605, 0.0
    %v1611 = vsel %vm246, %v1607, 0.0
    %v1612 = vsel %vm246, %v1608, 0.0
    %v1613 = vadd.f32 %v1611, %v1612
    %v1614 = vrot.slane %v1613, 4
    %v1615 = vadd.f32 %v1613, %v1614
    %v1616 = vrot.slane %v1615, 2
    %v1617 = vadd.f32 %v1615, %v1616
    %v1618 = vrot.slane %v1617, 1
    %v1619 = vadd.f32 %v1617, %v1618
    %v1620 = vrcp.pop 16.0
    %v1621 = vmul.f32 16.0, %v1620
    %v1622 = vsub.f32 1.0, %v1621
    %v1623 = vmul.f32 %v1620, %v1622
    %v1624 = vadd.f32 %v1620, %v1623
    %vm1625 = vweird.f32 %v1620
    %v1626 = vsel %vm1625, %v1620, %v1624
    %v1627 = vmul.f32 %v1619, %v1626
    %v1628 = vsel %vm246, %v1609, 0.0
    %v1629 = vsel %vm246, %v1610, 0.0
    %v1630 = vadd.f32 %v1628, %v1629
    %v1631 = vrot.slane %v1630, 4
    %v1632 = vadd.f32 %v1630, %v1631
    %v1633 = vrot.slane %v1632, 2
    %v1634 = vadd.f32 %v1632, %v1633
    %v1635 = vrot.slane %v1634, 1
    %v1636 = vadd.f32 %v1634, %v1635
    %v1637 = vmul.f32 %v1636, %v1626
    %vm1638 = vcmask 1040384
    %v1639 = vsel %vm1638, %v1627, %v1637
    %v1640 = vpack.c.bf16 %v1639, %v1639
    %v1641 = vld [vmem:[%s5] sm:$0xf]
    %v1642 = vld [vmem:[%s5 + $0x4] sm:$0xf]
    %v1643 = vld [vmem:[%s5 + $0x8] sm:$0xf]
    %v1644 = vld [vmem:[%s5 + $0xc] sm:$0xf]
    %v1645 = vld [vmem:[%s5 + $0x10] sm:$0xf]
    %v1646 = vld [vmem:[%s5 + $0x14] sm:$0xf]
    %v1647 = vld [vmem:[%s5 + $0x18] sm:$0xf]
    %v1648 = vld [vmem:[%s5 + $0x1c] sm:$0xf]
    %v1649 = vld [vmem:[%s6] sm:$0x1]
    %v1651 = vperm.slane %v1649, 0
    %v1661 = vunpack.c.l.b16 %v1641
    %v1662 = vunpack.c.l.b16 %v1642
    %v1663 = vunpack.c.l.b16 %v1643
    %v1664 = vunpack.c.l.b16 %v1644
    %v1665 = vunpack.c.l.b16 %v1645
    %v1666 = vunpack.c.l.b16 %v1646
    %v1667 = vunpack.c.l.b16 %v1647
    %v1668 = vunpack.c.l.b16 %v1648
    %v1669 = vpack.c.b16 %v1662, %v1661
    %v1670 = vpack.c.b16 %v1664, %v1663
    %v1671 = vpack.c.b16 %v1666, %v1665
    %v1672 = vpack.c.b16 %v1668, %v1667
    %v1678 = vsel %vm246, %v1640, 0
    %1680 = vmatpush.bf16.msra.mxu0 0
    %1681 = vmatpush.bf16.msra.mxu0 0
    %1682 = vmatpush.bf16.msra.mxu0 0
    %1683 = vmatpush.bf16.msra.mxu0 0
    %1684 = vmatpush.bf16.msra.mxu0 %v1672
    %1685 = vmatpush.bf16.msra.mxu0 %v1671
    %1686 = vmatpush.bf16.msra.mxu0 %v1670
    %1687 = vmatpush.bf16.msra.mxu0 %v1669
    %1688 = vmatmul.bf16.gmra.mxu0 %v1678
    %v1689 = vpop.f32.mrf.mxu0
    %v1690 = vadd.f32 %v1651, %v1689
    %v1691 = vpop.f32.mrf.mxu0
    %1692 = vdwg.mxu0
    %v1693 = vmax.f32 %v1690, 0.0
    %v1694 = vpack.c.bf16 %v1693, %v1693
    %v1695 = vld [vmem:[%s7] sm:$0xf]
    %v1696 = vld [vmem:[%s7 + $0x4] sm:$0xf]
    %v1697 = vld [vmem:[%s7 + $0x8] sm:$0xf]
    %v1698 = vld [vmem:[%s7 + $0xc] sm:$0xf]
    %v1699 = vld [vmem:[%s8] sm:$0x1]
    %v1701 = vperm.slane %v1699, 0
    %v1707 = vunpack.c.l.b16 %v1695
    %v1708 = vunpack.c.l.b16 %v1696
    %v1709 = vunpack.c.l.b16 %v1697
    %v1710 = vunpack.c.l.b16 %v1698
    %v1711 = vpack.c.b16 %v1708, %v1707
    %v1712 = vpack.c.b16 %v1710, %v1709
    %v1716 = vsel %vm242, %v1694, 0
    %1718 = vmatpush.bf16.msra.mxu0 0
    %1719 = vmatpush.bf16.msra.mxu0 0
    %1720 = vmatpush.bf16.msra.mxu0 0
    %1721 = vmatpush.bf16.msra.mxu0 0
    %1722 = vmatpush.bf16.msra.mxu0 0
    %1723 = vmatpush.bf16.msra.mxu0 0
    %1724 = vmatpush.bf16.msra.mxu0 %v1712
    %1725 = vmatpush.bf16.msra.mxu0 %v1711
    %1726 = vmatmul.bf16.gmra.mxu0 %v1716
    %v1727 = vpop.f32.mrf.mxu0
    %v1728 = vadd.f32 %v1701, %v1727
    %v1729 = vpop.f32.mrf.mxu0
    %1730 = vdwg.mxu0
    %vm1731 = vcmask 74752
    %1732 = vst.msk [vmem:[#allocation3] sm:$0x3] %vm1731, %v1728
    // Predicated region
    $region38: #{parent_model_simpleconv_forward.1} parent=1 // pred_check
      _
    $region39: #{parent_model_simpleconv_forward.1} parent=1 // pred_check_branch
      %1734 = sbr.rel (0) target = $region41
    $region40: #{parent_model_simpleconv_forward.1} parent=1 // pred_region
      %1736 = vsyncadd [#allocation4], 0
      %s1738 = sshll.u32 [#allocation3], 4
      %s1739 = int_to_ptr.vmem [resolvable:$true] %s1738
      %s1740 = sshll.u32 %s9, 4
      %s1741 = int_to_ptr.hbm [resolvable:$true] %s1740
      %1743 = dma.vmem_to_hbm [thread:$0]  %s1739, 32, %s1741, [#allocation4]
    $region41: #{parent_model_simpleconv_forward.1} parent=1 // pred_fallthru
      _
    // Predicated region
    $region42: #{parent_model_simpleconv_forward.1} parent=1 // pred_check
      _
    $region43: #{parent_model_simpleconv_forward.1} parent=1 // pred_check_branch
      %1745 = sbr.rel (0) target = $region45
    $region44: #{parent_model_simpleconv_forward.1} parent=1 // pred_region
      %1747 = dma.done [#allocation4], 32
    $region45: #{parent_model_simpleconv_forward.1} parent=1 // pred_fallthru
      _
    %1748 = vsyncpa [#allocation4], 1

</llo_original>
